<compile_context>
chip_gen: v7x
topology: tpu7x:2x2x1
jax: 0.10.0
libtpu: 0.0.40
codegen_flags: <defaults>
</compile_context>

<pallas_src>
import math

import jax
import jax.numpy as jnp
import numpy as np
from jax import lax
from jax.experimental import pallas as pl
from jax.experimental.pallas import tpu as pltpu

# ---------------- small config, consistent with the module ----------------
B = 2             # batch
S = 8             # seq_len
D = 32            # d_model
H = 4             # n_heads
HD = D // H       # head_dim = 8
HALF = HD // 2    # 4
F = 64            # ffn_dim
M = 32            # memory_dim (must equal d_model for the gating residual)
V = 128           # vocab_size (lane-dense output projection)
L = 2             # n_layers
HS = H * S        # 32
ROPE_BASE = 10000.0
RMS_EPS = 1e-8
NEG = -1e30       # additive mask value (exp underflows to exactly 0 in f32)

assert M == D, "gating residual (x + gate * retrieved) requires memory_dim == d_model"


# ---------------- in-kernel helpers ----------------
def _rmsnorm(x, w):
    # RMSNorm.forward: weight * x / (||x||_2 * d**-0.5 + eps)
    nrm = jnp.sqrt(jnp.sum(x * x, axis=-1, keepdims=True)) * (x.shape[-1] ** -0.5)
    return w * x / (nrm + RMS_EPS)


def _sigmoid(x):
    return 1.0 / (1.0 + jnp.exp(-x))


# ---------------- fully fused kernel: all layers + head ----------------
def fused_kernel(x_ref, rope_ref, hmask_ref, amask_ref, wl1p_ref, b1p_ref,
                 fnw_ref, wout_ref, n1w_ref, n2w_ref, wqk_ref, wv_ref, wo_ref,
                 wqg_ref, wmem2_ref, bmem2_ref, wf12_ref, wf3p_ref,
                 o_ref, xs_ref):
    f32 = jnp.float32
    bf16 = jnp.bfloat16
    l = pl.program_id(1)

    @pl.when(l == 0)
    def _():
        xs_ref[...] = x_ref[...]

    x0 = xs_ref[...]                                                   # (S, D) f32

    # ======== attention sublayer: x1 = x0 + MHA_RoPE(norm1(x0)), causal ========
    h = _rmsnorm(x0, n1w_ref[0]).astype(bf16)
    # fused [Q' | K' | Q'swap | K'swap] projection (de-interleave + 1/sqrt(hd)
    # scale folded into the columns host-side) -> one lane-dense 128-wide tile
    projqk = jnp.dot(h, wqk_ref[0], preferred_element_type=f32)        # (S, 4D)
    v = jnp.dot(h, wv_ref[0], preferred_element_type=f32)              # (S, D)

    # RoPE: one vmul against [cos|cos|sin|sin] + half-width roll + add
    prod = projqk * rope_ref[...]
    rot = prod + pltpu.roll(prod, shift=2 * D, axis=1)
    q = rot[:, 0:D]                                                    # rotated, scaled q
    k = rot[:, D:2 * D]                                                # rotated k

    hmask = hmask_ref[...]                                             # (HS, D) head mask
    # stack heads on rows of Q only (sublane concat, no MXU / lane moves)
    q_s = jnp.concatenate([q] * H, axis=0) * hmask                     # (HS, D)
    s = lax.dot_general(q_s.astype(bf16), k.astype(bf16),
                        (((1,), (1,)), ((), ())),
                        preferred_element_type=f32)                    # (HS, S)
    s = s + amask_ref[...]                                             # causal mask (f32)
    s = s - jnp.max(s, axis=-1, keepdims=True)
    p = jnp.exp(s)
    p = p * pl.reciprocal(jnp.sum(p, axis=-1, keepdims=True), approx=True)
    ctx = jnp.dot(p.astype(bf16), v.astype(bf16),
                  preferred_element_type=f32) * hmask                  # (HS, D)
    # merge heads: aligned row-slice adds (heads live in disjoint lane groups)
    merged = ctx[0:S, :]
    for hh in range(1, H):
        merged = merged + ctx[hh * S:(hh + 1) * S, :]                  # (S, D)
    attn_out = jnp.dot(merged.astype(bf16), wo_ref[0], preferred_element_type=f32)
    x1 = x0 + attn_out                                                 # dropout = identity

    # ======== neural-memory sublayer ========
    xm = _rmsnorm(x1, n2w_ref[0])                                      # x_for_memory
    # fused [gate_x | q_lmm] projection; the q_lmm bias is folded into b1p
    fused1 = jnp.dot(xm.astype(bf16), wqg_ref[0], preferred_element_type=f32)  # (S, D+M)
    gate_x = fused1[:, 0:D]
    h1 = jnp.maximum(
        jnp.dot(fused1.astype(bf16), wl1p_ref[...], preferred_element_type=f32)
        + b1p_ref[...], 0.0)                                           # (S, M)
    # fused [mem | mem @ Wgm (+ b2@Wgm + bg)] projection
    memout = (jnp.dot(h1.astype(bf16), wmem2_ref[0], preferred_element_type=f32)
              + bmem2_ref[0])                                          # (S, M+D)
    mem = memout[:, 0:M]
    gate = _sigmoid(gate_x + memout[:, M:M + D])
    x2 = x1 + gate * mem

    # ======== SwiGLU FFN (module reuses norm2 here) ========
    xf = _rmsnorm(x2, n2w_ref[0])
    ab = jnp.dot(xf.astype(bf16), wf12_ref[0], preferred_element_type=f32)      # (S, 2F)
    g = (ab * _sigmoid(ab)) * pltpu.roll(ab, shift=F, axis=1)          # lanes 0:F = silu(a)*b
    ffn_out = jnp.dot(g.astype(bf16), wf3p_ref[0], preferred_element_type=f32)  # zero-padded w3
    x3 = x2 + ffn_out

    xs_ref[...] = x3                                                   # carry to next layer

    # ======== final RMSNorm + vocab projection (last layer only) ========
    @pl.when(l == pl.num_programs(1) - 1)
    def _():
        xh = _rmsnorm(x3, fnw_ref[...])
        o_ref[...] = jnp.dot(xh.astype(bf16), wout_ref[...],
                             preferred_element_type=f32).astype(o_ref.dtype)


# ---------------- one-time host-side weight / table preparation ----------------
def _perm_swap():
    perm = np.concatenate([h * HD + np.concatenate([np.arange(0, HD, 2),
                                                    np.arange(1, HD, 2)])
                           for h in range(H)])
    swap = np.concatenate([h * HD + np.concatenate([np.arange(HALF, HD),
                                                    np.arange(0, HALF)])
                           for h in range(H)])
    return perm, swap


def _rope_table():
    """(S, 4D) table [cos | cos | sin_signed | sin_signed] in the de-interleaved layout."""
    t = np.arange(S, dtype=np.float32)
    inv_freq = 1.0 / (ROPE_BASE ** (np.arange(0, HD, 2, dtype=np.float32) / HD))  # (HALF,)
    lane = np.arange(D)
    j = lane % HD
    ang = t[:, None] * inv_freq[j % HALF][None, :]                     # (S, D)
    cos = np.cos(ang)
    sin = np.sin(ang) * np.where(j < HALF, -1.0, 1.0)[None, :]
    return jnp.asarray(np.concatenate([cos, cos, sin, sin], axis=1), jnp.float32)


def _head_mask():
    r = np.arange(HS)
    lane = np.arange(D)
    return jnp.asarray(((r[:, None] // S) == (lane[None, :] // HD)).astype(np.float32))


def _attn_mask():
    r = np.arange(HS)
    c = np.arange(S)
    ok = c[None, :] <= (r[:, None] % S)
    return jnp.asarray(np.where(ok, 0.0, NEG).astype(np.float32))


def prepare_params(params):
    """Fold permutations / scales / biases, fuse shared-input matmuls, stack
    per-layer weights along L, cast MXU operands to bf16.  Runs once, host-side."""
    bf = jnp.bfloat16
    perm, swap = _perm_swap()
    scale = 1.0 / math.sqrt(HD)
    mp = params['memory']

    wl1_t = mp['w1'].T                                                  # (M, M)
    wl1pad = jnp.concatenate([jnp.zeros((D, M), jnp.float32), wl1_t], axis=0)   # (D+M, M)
    b1p = (mp['bq'] @ wl1_t + mp['b1']).reshape(1, M)                   # bq folded into bias
    wl2_t = mp['w2'].T                                                  # (M, M)

    stk = {k: [] for k in ('n1w', 'n2w', 'wqk', 'wv', 'wo', 'wqg',
                           'wmem2', 'bmem2', 'wf12', 'wf3p')}
    for lp in params['layers']:
        wq_t = lp['wq'].T[:, perm] * scale
        wk_t = lp['wk'].T[:, perm]
        wqk = jnp.concatenate([wq_t, wk_t, wq_t[:, swap], wk_t[:, swap]], axis=1)  # (D, 4D)
        wg_t = lp['wg'].T                                               # (D+M, D)
        wgx, wgm = wg_t[:D, :], wg_t[D:, :]
        stk['n1w'].append(lp['n1w'].reshape(1, D))
        stk['n2w'].append(lp['n2w'].reshape(1, D))
        stk['wqk'].append(wqk)
        stk['wv'].append(lp['wv'].T)
        stk['wo'].append(lp['wo'].T)
        stk['wqg'].append(jnp.concatenate([wgx, mp['wq'].T], axis=1))   # (D, D+M)
        stk['wmem2'].append(jnp.concatenate([wl2_t, wl2_t @ wgm], axis=1))       # (M, M+D)
        stk['bmem2'].append(jnp.concatenate([mp['b2'],
                                             mp['b2'] @ wgm + lp['bg']]).reshape(1, M + D))
        stk['wf12'].append(jnp.concatenate([lp['wf1'].T, lp['wf2'].T], axis=1))  # (D, 2F)
        stk['wf3p'].append(jnp.concatenate([lp['wf3'].T,
                                            jnp.zeros((F, D), jnp.float32)], axis=0))

    return {
        'emb': params['emb'],
        'rope': _rope_table(),
        'hmask': _head_mask(),
        'amask': _attn_mask(),
        'wl1pad': wl1pad.astype(bf),
        'b1p': b1p,
        'fnw': params['final_norm'].reshape(1, D),
        'wout': params['wout'].T.astype(bf),
        'n1w': jnp.stack(stk['n1w']),
        'n2w': jnp.stack(stk['n2w']),
        'wqk': jnp.stack(stk['wqk']).astype(bf),
        'wv': jnp.stack(stk['wv']).astype(bf),
        'wo': jnp.stack(stk['wo']).astype(bf),
        'wqg': jnp.stack(stk['wqg']).astype(bf),
        'wmem2': jnp.stack(stk['wmem2']).astype(bf),
        'bmem2': jnp.stack(stk['bmem2']),
        'wf12': jnp.stack(stk['wf12']).astype(bf),
        'wf3p': jnp.stack(stk['wf3p']).astype(bf),
    }


# ---------------- forward (embedding gather in XLA + one fused pallas_call) ----------------
def nmt_forward(input_ids, prep):
    x = prep['emb'][input_ids] * math.sqrt(D)                           # (B, S, D)
    x2d = x.reshape(B * S, D).astype(jnp.float32)

    per_layer = lambda b, l: (l, 0, 0)
    shared = lambda b, l: (0, 0)

    in_specs = [
        pl.BlockSpec((S, D), lambda b, l: (b, 0)),        # x
        pl.BlockSpec((S, 4 * D), shared),                 # rope table
        pl.BlockSpec((HS, D), shared),                    # head mask
        pl.BlockSpec((HS, S), shared),                    # additive causal mask
        pl.BlockSpec((D + M, M), shared),                 # wl1 (zero-padded), shared LMM
        pl.BlockSpec((1, M), shared),                     # b1' = bq@wl1.T + b1
        pl.BlockSpec((1, D), shared),                     # final norm weight
        pl.BlockSpec((D, V), shared),                     # output projection
        pl.BlockSpec((1, 1, D), per_layer),               # n1w
        pl.BlockSpec((1, 1, D), per_layer),               # n2w
        pl.BlockSpec((1, D, 4 * D), per_layer),           # wqk
        pl.BlockSpec((1, D, D), per_layer),               # wv
        pl.BlockSpec((1, D, D), per_layer),               # wo
        pl.BlockSpec((1, D, D + M), per_layer),           # [wgx | wqm.T]
        pl.BlockSpec((1, M, M + D), per_layer),           # [wl2.T | wl2.T@wgm]
        pl.BlockSpec((1, 1, M + D), per_layer),           # [b2 | b2@wgm + bg]
        pl.BlockSpec((1, D, 2 * F), per_layer),           # [wf1.T | wf2.T]
        pl.BlockSpec((1, 2 * F, D), per_layer),           # [wf3.T ; 0]
    ]
    logits2d = pl.pallas_call(
        fused_kernel,
        out_shape=jax.ShapeDtypeStruct((B * S, V), jnp.float32),
        grid=(B, L),
        in_specs=in_specs,
        out_specs=pl.BlockSpec((S, V), lambda b, l: (b, 0)),
        scratch_shapes=[pltpu.VMEM((S, D), jnp.float32)],
        compiler_params=pltpu.CompilerParams(
            dimension_semantics=("parallel", "arbitrary")),
    )(x2d, prep['rope'], prep['hmask'], prep['amask'], prep['wl1pad'],
      prep['b1p'], prep['fnw'], prep['wout'], prep['n1w'], prep['n2w'],
      prep['wqk'], prep['wv'], prep['wo'], prep['wqg'], prep['wmem2'],
      prep['bmem2'], prep['wf12'], prep['wf3p'])
    return logits2d.reshape(B, S, V)


# ---------------- pure-JAX reference mirroring the PyTorch forward ----------------
def _rmsnorm_ref(x, w):
    nrm = jnp.linalg.norm(x, axis=-1, keepdims=True) * (x.shape[-1] ** -0.5)
    return w * x / (nrm + RMS_EPS)


def _apply_rotary_emb_ref(x, sin, cos):
    sin = sin[None, None]
    cos = cos[None, None]
    x1, x2 = x[..., ::2], x[..., 1::2]
    return jnp.concatenate([x1 * cos - x2 * sin, x1 * sin + x2 * cos], axis=-1)


def _attn_ref(x, lp):
    q = (x @ lp['wq'].T).reshape(B, S, H, HD).transpose(0, 2, 1, 3)
    k = (x @ lp['wk'].T).reshape(B, S, H, HD).transpose(0, 2, 1, 3)
    v = (x @ lp['wv'].T).reshape(B, S, H, HD).transpose(0, 2, 1, 3)
    t = jnp.arange(S, dtype=jnp.float32)
    inv_freq = 1.0 / (ROPE_BASE ** (jnp.arange(0, HD, 2, dtype=jnp.float32) / HD))
    ang = jnp.einsum('i,j->ij', t, inv_freq)
    sin, cos = jnp.sin(ang), jnp.cos(ang)
    q = _apply_rotary_emb_ref(q, sin, cos)
    k = _apply_rotary_emb_ref(k, sin, cos)
    scores = jnp.einsum('bhqd,bhkd->bhqk', q, k) / math.sqrt(HD)
    causal = jnp.tril(jnp.ones((S, S), dtype=bool))
    scores = jnp.where(causal[None, None], scores, -jnp.inf)
    attn = jax.nn.softmax(scores, axis=-1)
    out = jnp.einsum('bhqk,bhkd->bhqd', attn, v)
    return out.transpose(0, 2, 1, 3).reshape(B, S, D) @ lp['wo'].T


def _memory_ref(x, mp):
    q = x @ mp['wq'].T + mp['bq']
    h = jax.nn.relu(q @ mp['w1'].T + mp['b1'])
    return h @ mp['w2'].T + mp['b2']


def _block_ref(x, lp, mp):
    x = x + _attn_ref(_rmsnorm_ref(x, lp['n1w']), lp)
    xm = _rmsnorm_ref(x, lp['n2w'])
    mem = _memory_ref(xm, mp)
    gate = jax.nn.sigmoid(jnp.concatenate([xm, mem], axis=-1) @ lp['wg'].T + lp['bg'])
    x = x + gate * mem
    xf = _rmsnorm_ref(x, lp['n2w'])
    x = x + (jax.nn.silu(xf @ lp['wf1'].T) * (xf @ lp['wf2'].T)) @ lp['wf3'].T
    return x


def nmt_forward_ref(input_ids, params):
    x = params['emb'][input_ids] * math.sqrt(D)
    for lp in params['layers']:
        x = _block_ref(x, lp, params['memory'])
    x = _rmsnorm_ref(x, params['final_norm'])
    return x @ params['wout'].T


# ---------------- demo / verification ----------------
if __name__ == "__main__":
    key = jax.random.PRNGKey(0)
    keys = iter(jax.random.split(key, 64))

    def normal(shape, std=0.02):
        return std * jax.random.normal(next(keys), shape, dtype=jnp.float32)

    def norm_w(dim):
        return jnp.ones((dim,), jnp.float32) + 0.05 * jax.random.normal(next(keys), (dim,))

    params = {
        'emb': normal((V, D)),
        'final_norm': norm_w(D),
        'wout': normal((V, D)),
        'memory': {  # shared by all layers, like the single NeuralMemoryModule instance
            'wq': normal((M, D)), 'bq': normal((M,)),
            'w1': normal((M, M)), 'b1': normal((M,)),
            'w2': normal((M, M)), 'b2': normal((M,)),
        },
        'layers': [],
    }
    for _ in range(L):
        params['layers'].append({
            'n1w': norm_w(D), 'n2w': norm_w(D),
            'wq': normal((D, D)), 'wk': normal((D, D)),
            'wv': normal((D, D)), 'wo': normal((D, D)),
            'wg': normal((D, D + M)), 'bg': normal((D,)),
            'wf1': normal((F, D)), 'wf2': normal((F, D)), 'wf3': normal((D, F)),
        })

    input_ids = jax.random.randint(next(keys), (B, S), 1, V)

    prep = prepare_params(params)                      # one-time host-side prep
    out = jax.block_until_ready(jax.jit(nmt_forward)(input_ids, prep))
    ref = jax.block_until_ready(nmt_forward_ref(input_ids, params))
    # bf16 MXU operands -> slightly looser tolerance than a pure-f32 kernel
    np.testing.assert_allclose(np.asarray(out), np.asarray(ref), rtol=2e-2, atol=5e-3)
    print("KERNEL_OK")
</pallas_src>

<mosaic_0001>
module attributes {stable_mosaic.version = 11 : i64} {
  func.func @fused_kernel(%arg0: i32, %arg1: i32, %arg2: memref<8x32xf32, #tpu.memory_space<vmem>>, %arg3: memref<8x128xf32, #tpu.memory_space<vmem>>, %arg4: memref<32x32xf32, #tpu.memory_space<vmem>>, %arg5: memref<32x8xf32, #tpu.memory_space<vmem>>, %arg6: memref<64x32xbf16, #tpu.memory_space<vmem>>, %arg7: memref<1x32xf32, #tpu.memory_space<vmem>>, %arg8: memref<1x32xf32, #tpu.memory_space<vmem>>, %arg9: memref<32x128xbf16, #tpu.memory_space<vmem>>, %arg10: memref<1x1x32xf32, #tpu.memory_space<vmem>>, %arg11: memref<1x1x32xf32, #tpu.memory_space<vmem>>, %arg12: memref<1x32x128xbf16, #tpu.memory_space<vmem>>, %arg13: memref<1x32x32xbf16, #tpu.memory_space<vmem>>, %arg14: memref<1x32x32xbf16, #tpu.memory_space<vmem>>, %arg15: memref<1x32x64xbf16, #tpu.memory_space<vmem>>, %arg16: memref<1x32x64xbf16, #tpu.memory_space<vmem>>, %arg17: memref<1x1x64xf32, #tpu.memory_space<vmem>>, %arg18: memref<1x32x128xbf16, #tpu.memory_space<vmem>>, %arg19: memref<1x128x32xbf16, #tpu.memory_space<vmem>>, %arg20: memref<8x128xf32, #tpu.memory_space<vmem>>, %arg21: memref<8x32xf32, #tpu.memory_space<vmem>>) attributes {dimension_semantics = [#tpu.dimension_semantics<parallel>, #tpu.dimension_semantics<arbitrary>], iteration_bounds = array<i64: 2, 2>, scalar_prefetch = 0 : i64, scratch_operands = 1 : i64, tpu.core_type = #tpu.core_type<tc>, window_params = [{transform_indices = @transform_0, window_bounds = array<i64: 8, 32>}, {pipeline_mode = #tpu.pipeline_mode<synchronous>, transform_indices = @transform_1, window_bounds = array<i64: 8, 128>}, {pipeline_mode = #tpu.pipeline_mode<synchronous>, transform_indices = @transform_2, window_bounds = array<i64: 32, 32>}, {pipeline_mode = #tpu.pipeline_mode<synchronous>, transform_indices = @transform_3, window_bounds = array<i64: 32, 8>}, {pipeline_mode = #tpu.pipeline_mode<synchronous>, transform_indices = @transform_4, window_bounds = array<i64: 64, 32>}, {pipeline_mode = #tpu.pipeline_mode<synchronous>, transform_indices = @transform_5, window_bounds = array<i64: 1, 32>}, {pipeline_mode = #tpu.pipeline_mode<synchronous>, transform_indices = @transform_6, window_bounds = array<i64: 1, 32>}, {pipeline_mode = #tpu.pipeline_mode<synchronous>, transform_indices = @transform_7, window_bounds = array<i64: 32, 128>}, {transform_indices = @transform_8, window_bounds = array<i64: 1, 1, 32>}, {transform_indices = @transform_9, window_bounds = array<i64: 1, 1, 32>}, {transform_indices = @transform_10, window_bounds = array<i64: 1, 32, 128>}, {transform_indices = @transform_11, window_bounds = array<i64: 1, 32, 32>}, {transform_indices = @transform_12, window_bounds = array<i64: 1, 32, 32>}, {transform_indices = @transform_13, window_bounds = array<i64: 1, 32, 64>}, {transform_indices = @transform_14, window_bounds = array<i64: 1, 32, 64>}, {transform_indices = @transform_15, window_bounds = array<i64: 1, 1, 64>}, {transform_indices = @transform_16, window_bounds = array<i64: 1, 32, 128>}, {transform_indices = @transform_17, window_bounds = array<i64: 1, 128, 32>}, {transform_indices = @transform_18, window_bounds = array<i64: 8, 128>}]} {
    %c0_i32 = arith.constant 0 : i32
    %0 = arith.cmpi eq, %arg1, %c0_i32 : i32
    %1 = arith.extui %0 : i1 to i32
    %c0_i32_0 = arith.constant 0 : i32
    %2 = arith.cmpi ne, %1, %c0_i32_0 : i32
    scf.if %2 {
      %c0_76 = arith.constant 0 : index
      %c0_77 = arith.constant 0 : index
      %149 = vector.load %arg2[%c0_76, %c0_77] : memref<8x32xf32, #tpu.memory_space<vmem>>, vector<8x32xf32>
      %c0_78 = arith.constant 0 : index
      %c0_79 = arith.constant 0 : index
      %150 = vector.load %arg21[%c0_78, %c0_79] : memref<8x32xf32, #tpu.memory_space<vmem>>, vector<8x32xf32>
      tpu.vector_store %arg21[%c0_78, %c0_79], %149 {strides = array<i32>} : memref<8x32xf32, #tpu.memory_space<vmem>>, vector<8x32xf32>,
    } else {
    }
    %c0 = arith.constant 0 : index
    %c0_1 = arith.constant 0 : index
    %3 = vector.load %arg21[%c0, %c0_1] : memref<8x32xf32, #tpu.memory_space<vmem>>, vector<8x32xf32>
    %c0_2 = arith.constant 0 : index
    %c0_3 = arith.constant 0 : index
    %c0_4 = arith.constant 0 : index
    %4 = vector.load %arg10[%c0_2, %c0_3, %c0_4] : memref<1x1x32xf32, #tpu.memory_space<vmem>>, vector<1x1x32xf32>
    %5 = vector.shape_cast %4 : vector<1x1x32xf32> to vector<1x32xf32>
    %6 = arith.mulf %3, %3 : vector<8x32xf32>
    %cst = arith.constant dense<0.000000e+00> : vector<8xf32>
    %7 = vector.multi_reduction <add>, %6, %cst [1] : vector<8x32xf32> to vector<8xf32>
    %8 = vector.shape_cast %7 : vector<8xf32> to vector<8x1xf32>
    %9 = math.sqrt %8 : vector<8x1xf32>
    %cst_5 = arith.constant 0.176776692 : f32
    %10 = vector.broadcast %cst_5 : f32 to vector<8x1xf32>
    %11 = arith.mulf %9, %10 : vector<8x1xf32>
    %12 = vector.broadcast %5 : vector<1x32xf32> to vector<8x32xf32>
    %13 = arith.mulf %12, %3 : vector<8x32xf32>
    %cst_6 = arith.constant 9.99999993E-9 : f32
    %14 = vector.broadcast %cst_6 : f32 to vector<8x1xf32>
    %15 = arith.addf %11, %14 : vector<8x1xf32>
    %16 = vector.broadcast %15 : vector<8x1xf32> to vector<8x32xf32>
    %17 = arith.divf %13, %16 : vector<8x32xf32>
    %18 = arith.truncf %17 : vector<8x32xf32> to vector<8x32xbf16>
    %c0_7 = arith.constant 0 : index
    %c0_8 = arith.constant 0 : index
    %c0_9 = arith.constant 0 : index
    %19 = vector.load %arg12[%c0_7, %c0_8, %c0_9] : memref<1x32x128xbf16, #tpu.memory_space<vmem>>, vector<1x32x128xbf16>
    %20 = vector.shape_cast %19 : vector<1x32x128xbf16> to vector<32x128xbf16>
    %cst_10 = arith.constant dense<0.000000e+00> : vector<8x128xf32>
    %21 = tpu.matmul %18, %20, %cst_10 {dimension_numbers = #tpu.dot_dimension_numbers<[1], [0], [0], [1], [0, 0, 1, 1], [], []>} : vector<8x32xbf16>, vector<32x128xbf16>, vector<8x128xf32> -> vector<8x128xf32>
    %c0_11 = arith.constant 0 : index
    %c0_12 = arith.constant 0 : index
    %c0_13 = arith.constant 0 : index
    %22 = vector.load %arg13[%c0_11, %c0_12, %c0_13] : memref<1x32x32xbf16, #tpu.memory_space<vmem>>, vector<1x32x32xbf16>
    %23 = vector.shape_cast %22 : vector<1x32x32xbf16> to vector<32x32xbf16>
    %cst_14 = arith.constant dense<0.000000e+00> : vector<8x32xf32>
    %24 = tpu.matmul %18, %23, %cst_14 {dimension_numbers = #tpu.dot_dimension_numbers<[1], [0], [0], [1], [0, 0, 1, 1], [], []>} : vector<8x32xbf16>, vector<32x32xbf16>, vector<8x32xf32> -> vector<8x32xf32>
    %c0_15 = arith.constant 0 : index
    %c0_16 = arith.constant 0 : index
    %25 = vector.load %arg3[%c0_15, %c0_16] : memref<8x128xf32, #tpu.memory_space<vmem>>, vector<8x128xf32>
    %26 = arith.mulf %21, %25 : vector<8x128xf32>
    %c64_i32 = arith.constant 64 : i32
    %27 = tpu.dynamic_rotate %26 by %c64_i32 dim 1 : vector<8x128xf32>, i32 -> vector<8x128xf32>
    %28 = arith.addf %26, %27 : vector<8x128xf32>
    %29 = vector.extract_strided_slice %28 {offsets = [0, 0], sizes = [8, 32], strides = [1, 1]} : vector<8x128xf32> to vector<8x32xf32>
    %30 = vector.extract_strided_slice %28 {offsets = [0, 32], sizes = [8, 32], strides = [1, 1]} : vector<8x128xf32> to vector<8x32xf32>
    %c0_17 = arith.constant 0 : index
    %c0_18 = arith.constant 0 : index
    %31 = vector.load %arg4[%c0_17, %c0_18] : memref<32x32xf32, #tpu.memory_space<vmem>>, vector<32x32xf32>
    %32 = tpu.concatenate %29, %29, %29, %29 in 0 : vector<8x32xf32>, vector<8x32xf32>, vector<8x32xf32>, vector<8x32xf32> -> vector<32x32xf32>
    %33 = arith.mulf %32, %31 : vector<32x32xf32>
    %34 = arith.truncf %33 : vector<32x32xf32> to vector<32x32xbf16>
    %35 = arith.truncf %30 : vector<8x32xf32> to vector<8x32xbf16>
    %cst_19 = arith.constant dense<0.000000e+00> : vector<32x8xf32>
    %36 = tpu.matmul %34, %35, %cst_19 {dimension_numbers = #tpu.dot_dimension_numbers<[1], [1], [0], [0], [0, 0, 1, 0], [], []>} : vector<32x32xbf16>, vector<8x32xbf16>, vector<32x8xf32> -> vector<32x8xf32>
    %c0_20 = arith.constant 0 : index
    %c0_21 = arith.constant 0 : index
    %37 = vector.load %arg5[%c0_20, %c0_21] : memref<32x8xf32, #tpu.memory_space<vmem>>, vector<32x8xf32>
    %38 = arith.addf %36, %37 : vector<32x8xf32>
    %cst_22 = arith.constant dense<0xFF800000> : vector<32xf32>
    %39 = vector.multi_reduction <maximumf>, %38, %cst_22 [1] : vector<32x8xf32> to vector<32xf32>
    %40 = vector.shape_cast %39 : vector<32xf32> to vector<32x1xf32>
    %41 = vector.broadcast %40 : vector<32x1xf32> to vector<32x8xf32>
    %42 = arith.subf %38, %41 : vector<32x8xf32>
    %43 = math.exp %42 : vector<32x8xf32>
    %cst_23 = arith.constant dense<0.000000e+00> : vector<32xf32>
    %44 = vector.multi_reduction <add>, %43, %cst_23 [1] : vector<32x8xf32> to vector<32xf32>
    %45 = vector.shape_cast %44 : vector<32xf32> to vector<32x1xf32>
    %46 = tpu.reciprocal %45 {approx = true} : vector<32x1xf32> -> vector<32x1xf32>
    %47 = vector.broadcast %46 : vector<32x1xf32> to vector<32x8xf32>
    %48 = arith.mulf %43, %47 : vector<32x8xf32>
    %49 = arith.truncf %48 : vector<32x8xf32> to vector<32x8xbf16>
    %50 = arith.truncf %24 : vector<8x32xf32> to vector<8x32xbf16>
    %cst_24 = arith.constant dense<0.000000e+00> : vector<32x32xf32>
    %51 = tpu.matmul %49, %50, %cst_24 {dimension_numbers = #tpu.dot_dimension_numbers<[1], [0], [0], [1], [0, 0, 1, 1], [], []>} : vector<32x8xbf16>, vector<8x32xbf16>, vector<32x32xf32> -> vector<32x32xf32>
    %52 = arith.mulf %51, %31 : vector<32x32xf32>
    %53 = vector.extract_strided_slice %52 {offsets = [0, 0], sizes = [8, 32], strides = [1, 1]} : vector<32x32xf32> to vector<8x32xf32>
    %54 = vector.extract_strided_slice %52 {offsets = [8, 0], sizes = [8, 32], strides = [1, 1]} : vector<32x32xf32> to vector<8x32xf32>
    %55 = arith.addf %53, %54 : vector<8x32xf32>
    %56 = vector.extract_strided_slice %52 {offsets = [16, 0], sizes = [8, 32], strides = [1, 1]} : vector<32x32xf32> to vector<8x32xf32>
    %57 = arith.addf %55, %56 : vector<8x32xf32>
    %58 = vector.extract_strided_slice %52 {offsets = [24, 0], sizes = [8, 32], strides = [1, 1]} : vector<32x32xf32> to vector<8x32xf32>
    %59 = arith.addf %57, %58 : vector<8x32xf32>
    %60 = arith.truncf %59 : vector<8x32xf32> to vector<8x32xbf16>
    %c0_25 = arith.constant 0 : index
    %c0_26 = arith.constant 0 : index
    %c0_27 = arith.constant 0 : index
    %61 = vector.load %arg14[%c0_25, %c0_26, %c0_27] : memref<1x32x32xbf16, #tpu.memory_space<vmem>>, vector<1x32x32xbf16>
    %62 = vector.shape_cast %61 : vector<1x32x32xbf16> to vector<32x32xbf16>
    %cst_28 = arith.constant dense<0.000000e+00> : vector<8x32xf32>
    %63 = tpu.matmul %60, %62, %cst_28 {dimension_numbers = #tpu.dot_dimension_numbers<[1], [0], [0], [1], [0, 0, 1, 1], [], []>} : vector<8x32xbf16>, vector<32x32xbf16>, vector<8x32xf32> -> vector<8x32xf32>
    %64 = arith.addf %3, %63 : vector<8x32xf32>
    %c0_29 = arith.constant 0 : index
    %c0_30 = arith.constant 0 : index
    %c0_31 = arith.constant 0 : index
    %65 = vector.load %arg11[%c0_29, %c0_30, %c0_31] : memref<1x1x32xf32, #tpu.memory_space<vmem>>, vector<1x1x32xf32>
    %66 = vector.shape_cast %65 : vector<1x1x32xf32> to vector<1x32xf32>
    %67 = arith.mulf %64, %64 : vector<8x32xf32>
    %cst_32 = arith.constant dense<0.000000e+00> : vector<8xf32>
    %68 = vector.multi_reduction <add>, %67, %cst_32 [1] : vector<8x32xf32> to vector<8xf32>
    %69 = vector.shape_cast %68 : vector<8xf32> to vector<8x1xf32>
    %70 = math.sqrt %69 : vector<8x1xf32>
    %cst_33 = arith.constant 0.176776692 : f32
    %71 = vector.broadcast %cst_33 : f32 to vector<8x1xf32>
    %72 = arith.mulf %70, %71 : vector<8x1xf32>
    %73 = vector.broadcast %66 : vector<1x32xf32> to vector<8x32xf32>
    %74 = arith.mulf %73, %64 : vector<8x32xf32>
    %cst_34 = arith.constant 9.99999993E-9 : f32
    %75 = vector.broadcast %cst_34 : f32 to vector<8x1xf32>
    %76 = arith.addf %72, %75 : vector<8x1xf32>
    %77 = vector.broadcast %76 : vector<8x1xf32> to vector<8x32xf32>
    %78 = arith.divf %74, %77 : vector<8x32xf32>
    %79 = arith.truncf %78 : vector<8x32xf32> to vector<8x32xbf16>
    %c0_35 = arith.constant 0 : index
    %c0_36 = arith.constant 0 : index
    %c0_37 = arith.constant 0 : index
    %80 = vector.load %arg15[%c0_35, %c0_36, %c0_37] : memref<1x32x64xbf16, #tpu.memory_space<vmem>>, vector<1x32x64xbf16>
    %81 = vector.shape_cast %80 : vector<1x32x64xbf16> to vector<32x64xbf16>
    %cst_38 = arith.constant dense<0.000000e+00> : vector<8x64xf32>
    %82 = tpu.matmul %79, %81, %cst_38 {dimension_numbers = #tpu.dot_dimension_numbers<[1], [0], [0], [1], [0, 0, 1, 1], [], []>} : vector<8x32xbf16>, vector<32x64xbf16>, vector<8x64xf32> -> vector<8x64xf32>
    %83 = vector.extract_strided_slice %82 {offsets = [0, 0], sizes = [8, 32], strides = [1, 1]} : vector<8x64xf32> to vector<8x32xf32>
    %84 = arith.truncf %82 : vector<8x64xf32> to vector<8x64xbf16>
    %c0_39 = arith.constant 0 : index
    %c0_40 = arith.constant 0 : index
    %85 = vector.load %arg6[%c0_39, %c0_40] : memref<64x32xbf16, #tpu.memory_space<vmem>>, vector<64x32xbf16>
    %cst_41 = arith.constant dense<0.000000e+00> : vector<8x32xf32>
    %86 = tpu.matmul %84, %85, %cst_41 {dimension_numbers = #tpu.dot_dimension_numbers<[1], [0], [0], [1], [0, 0, 1, 1], [], []>} : vector<8x64xbf16>, vector<64x32xbf16>, vector<8x32xf32> -> vector<8x32xf32>
    %c0_42 = arith.constant 0 : index
    %c0_43 = arith.constant 0 : index
    %87 = vector.load %arg7[%c0_42, %c0_43] : memref<1x32xf32, #tpu.memory_space<vmem>>, vector<1x32xf32>
    %88 = vector.broadcast %87 : vector<1x32xf32> to vector<8x32xf32>
    %89 = arith.addf %86, %88 : vector<8x32xf32>
    %cst_44 = arith.constant 0.000000e+00 : f32
    %90 = vector.broadcast %cst_44 : f32 to vector<8x32xf32>
    %91 = arith.maximumf %89, %90 : vector<8x32xf32>
    %92 = arith.truncf %91 : vector<8x32xf32> to vector<8x32xbf16>
    %c0_45 = arith.constant 0 : index
    %c0_46 = arith.constant 0 : index
    %c0_47 = arith.constant 0 : index
    %93 = vector.load %arg16[%c0_45, %c0_46, %c0_47] : memref<1x32x64xbf16, #tpu.memory_space<vmem>>, vector<1x32x64xbf16>
    %94 = vector.shape_cast %93 : vector<1x32x64xbf16> to vector<32x64xbf16>
    %cst_48 = arith.constant dense<0.000000e+00> : vector<8x64xf32>
    %95 = tpu.matmul %92, %94, %cst_48 {dimension_numbers = #tpu.dot_dimension_numbers<[1], [0], [0], [1], [0, 0, 1, 1], [], []>} : vector<8x32xbf16>, vector<32x64xbf16>, vector<8x64xf32> -> vector<8x64xf32>
    %c0_49 = arith.constant 0 : index
    %c0_50 = arith.constant 0 : index
    %c0_51 = arith.constant 0 : index
    %96 = vector.load %arg17[%c0_49, %c0_50, %c0_51] : memref<1x1x64xf32, #tpu.memory_space<vmem>>, vector<1x1x64xf32>
    %97 = vector.shape_cast %96 : vector<1x1x64xf32> to vector<1x64xf32>
    %98 = vector.broadcast %97 : vector<1x64xf32> to vector<8x64xf32>
    %99 = arith.addf %95, %98 : vector<8x64xf32>
    %100 = vector.extract_strided_slice %99 {offsets = [0, 0], sizes = [8, 32], strides = [1, 1]} : vector<8x64xf32> to vector<8x32xf32>
    %101 = vector.extract_strided_slice %99 {offsets = [0, 32], sizes = [8, 32], strides = [1, 1]} : vector<8x64xf32> to vector<8x32xf32>
    %102 = arith.addf %83, %101 : vector<8x32xf32>
    %cst_52 = arith.constant 0.000000e+00 : f32
    %103 = vector.broadcast %cst_52 : f32 to vector<8x32xf32>
    %104 = arith.subf %103, %102 : vector<8x32xf32>
    %105 = math.exp %104 : vector<8x32xf32>
    %cst_53 = arith.constant 1.000000e+00 : f32
    %106 = vector.broadcast %cst_53 : f32 to vector<8x32xf32>
    %107 = arith.addf %106, %105 : vector<8x32xf32>
    %cst_54 = arith.constant 1.000000e+00 : f32
    %108 = vector.broadcast %cst_54 : f32 to vector<8x32xf32>
    %109 = arith.divf %108, %107 : vector<8x32xf32>
    %110 = arith.mulf %109, %100 : vector<8x32xf32>
    %111 = arith.addf %64, %110 : vector<8x32xf32>
    %c0_55 = arith.constant 0 : index
    %c0_56 = arith.constant 0 : index
    %c0_57 = arith.constant 0 : index
    %112 = vector.load %arg11[%c0_55, %c0_56, %c0_57] : memref<1x1x32xf32, #tpu.memory_space<vmem>>, vector<1x1x32xf32>
    %113 = vector.shape_cast %112 : vector<1x1x32xf32> to vector<1x32xf32>
    %114 = arith.mulf %111, %111 : vector<8x32xf32>
    %cst_58 = arith.constant dense<0.000000e+00> : vector<8xf32>
    %115 = vector.multi_reduction <add>, %114, %cst_58 [1] : vector<8x32xf32> to vector<8xf32>
    %116 = vector.shape_cast %115 : vector<8xf32> to vector<8x1xf32>
    %117 = math.sqrt %116 : vector<8x1xf32>
    %cst_59 = arith.constant 0.176776692 : f32
    %118 = vector.broadcast %cst_59 : f32 to vector<8x1xf32>
    %119 = arith.mulf %117, %118 : vector<8x1xf32>
    %120 = vector.broadcast %113 : vector<1x32xf32> to vector<8x32xf32>
    %121 = arith.mulf %120, %111 : vector<8x32xf32>
    %cst_60 = arith.constant 9.99999993E-9 : f32
    %122 = vector.broadcast %cst_60 : f32 to vector<8x1xf32>
    %123 = arith.addf %119, %122 : vector<8x1xf32>
    %124 = vector.broadcast %123 : vector<8x1xf32> to vector<8x32xf32>
    %125 = arith.divf %121, %124 : vector<8x32xf32>
    %126 = arith.truncf %125 : vector<8x32xf32> to vector<8x32xbf16>
    %c0_61 = arith.constant 0 : index
    %c0_62 = arith.constant 0 : index
    %c0_63 = arith.constant 0 : index
    %127 = vector.load %arg18[%c0_61, %c0_62, %c0_63] : memref<1x32x128xbf16, #tpu.memory_space<vmem>>, vector<1x32x128xbf16>
    %128 = vector.shape_cast %127 : vector<1x32x128xbf16> to vector<32x128xbf16>
    %cst_64 = arith.constant dense<0.000000e+00> : vector<8x128xf32>
    %129 = tpu.matmul %126, %128, %cst_64 {dimension_numbers = #tpu.dot_dimension_numbers<[1], [0], [0], [1], [0, 0, 1, 1], [], []>} : vector<8x32xbf16>, vector<32x128xbf16>, vector<8x128xf32> -> vector<8x128xf32>
    %cst_65 = arith.constant 0.000000e+00 : f32
    %130 = vector.broadcast %cst_65 : f32 to vector<8x128xf32>
    %131 = arith.subf %130, %129 : vector<8x128xf32>
    %132 = math.exp %131 : vector<8x128xf32>
    %cst_66 = arith.constant 1.000000e+00 : f32
    %133 = vector.broadcast %cst_66 : f32 to vector<8x128xf32>
    %134 = arith.addf %133, %132 : vector<8x128xf32>
    %cst_67 = arith.constant 1.000000e+00 : f32
    %135 = vector.broadcast %cst_67 : f32 to vector<8x128xf32>
    %136 = arith.divf %135, %134 : vector<8x128xf32>
    %137 = arith.mulf %129, %136 : vector<8x128xf32>
    %c64_i32_68 = arith.constant 64 : i32
    %138 = tpu.dynamic_rotate %129 by %c64_i32_68 dim 1 : vector<8x128xf32>, i32 -> vector<8x128xf32>
    %139 = arith.mulf %137, %138 : vector<8x128xf32>
    %140 = arith.truncf %139 : vector<8x128xf32> to vector<8x128xbf16>
    %c0_69 = arith.constant 0 : index
    %c0_70 = arith.constant 0 : index
    %c0_71 = arith.constant 0 : index
    %141 = vector.load %arg19[%c0_69, %c0_70, %c0_71] : memref<1x128x32xbf16, #tpu.memory_space<vmem>>, vector<1x128x32xbf16>
    %142 = vector.shape_cast %141 : vector<1x128x32xbf16> to vector<128x32xbf16>
    %cst_72 = arith.constant dense<0.000000e+00> : vector<8x32xf32>
    %143 = tpu.matmul %140, %142, %cst_72 {dimension_numbers = #tpu.dot_dimension_numbers<[1], [0], [0], [1], [0, 0, 1, 1], [], []>} : vector<8x128xbf16>, vector<128x32xbf16>, vector<8x32xf32> -> vector<8x32xf32>
    %144 = arith.addf %111, %143 : vector<8x32xf32>
    %c0_73 = arith.constant 0 : index
    %c0_74 = arith.constant 0 : index
    %145 = vector.load %arg21[%c0_73, %c0_74] : memref<8x32xf32, #tpu.memory_space<vmem>>, vector<8x32xf32>
    tpu.vector_store %arg21[%c0_73, %c0_74], %144 {strides = array<i32>} : memref<8x32xf32, #tpu.memory_space<vmem>>, vector<8x32xf32>,
    %c1_i32 = arith.constant 1 : i32
    %146 = arith.cmpi eq, %arg1, %c1_i32 : i32
    %147 = arith.extui %146 : i1 to i32
    %c0_i32_75 = arith.constant 0 : i32
    %148 = arith.cmpi ne, %147, %c0_i32_75 : i32
    scf.if %148 {
      %c0_76 = arith.constant 0 : index
      %c0_77 = arith.constant 0 : index
      %149 = vector.load %arg8[%c0_76, %c0_77] : memref<1x32xf32, #tpu.memory_space<vmem>>, vector<1x32xf32>
      %150 = arith.mulf %144, %144 : vector<8x32xf32>
      %cst_78 = arith.constant dense<0.000000e+00> : vector<8xf32>
      %151 = vector.multi_reduction <add>, %150, %cst_78 [1] : vector<8x32xf32> to vector<8xf32>
      %152 = vector.shape_cast %151 : vector<8xf32> to vector<8x1xf32>
      %153 = math.sqrt %152 : vector<8x1xf32>
      %cst_79 = arith.constant 0.176776692 : f32
      %154 = vector.broadcast %cst_79 : f32 to vector<8x1xf32>
      %155 = arith.mulf %153, %154 : vector<8x1xf32>
      %156 = vector.broadcast %149 : vector<1x32xf32> to vector<8x32xf32>
      %157 = arith.mulf %156, %144 : vector<8x32xf32>
      %cst_80 = arith.constant 9.99999993E-9 : f32
      %158 = vector.broadcast %cst_80 : f32 to vector<8x1xf32>
      %159 = arith.addf %155, %158 : vector<8x1xf32>
      %160 = vector.broadcast %159 : vector<8x1xf32> to vector<8x32xf32>
      %161 = arith.divf %157, %160 : vector<8x32xf32>
      %162 = arith.truncf %161 : vector<8x32xf32> to vector<8x32xbf16>
      %c0_81 = arith.constant 0 : index
      %c0_82 = arith.constant 0 : index
      %163 = vector.load %arg9[%c0_81, %c0_82] : memref<32x128xbf16, #tpu.memory_space<vmem>>, vector<32x128xbf16>
      %cst_83 = arith.constant dense<0.000000e+00> : vector<8x128xf32>
      %164 = tpu.matmul %162, %163, %cst_83 {dimension_numbers = #tpu.dot_dimension_numbers<[1], [0], [0], [1], [0, 0, 1, 1], [], []>} : vector<8x32xbf16>, vector<32x128xbf16>, vector<8x128xf32> -> vector<8x128xf32>
      %c0_84 = arith.constant 0 : index
      %c0_85 = arith.constant 0 : index
      %165 = vector.load %arg20[%c0_84, %c0_85] : memref<8x128xf32, #tpu.memory_space<vmem>>, vector<8x128xf32>
      tpu.vector_store %arg20[%c0_84, %c0_85], %164 {strides = array<i32>} : memref<8x128xf32, #tpu.memory_space<vmem>>, vector<8x128xf32>,
    } else {
    }
    return
  }
  func.func @transform_0(%arg0: i32, %arg1: i32) -> (i32, i32) {
    %c0_i32 = arith.constant 0 : i32
    %c0_i32_0 = arith.constant 0 : i32
    return %arg0, %c0_i32 : i32, i32
  }
  func.func @transform_1(%arg0: i32, %arg1: i32) -> (i32, i32) {
    %c0_i32 = arith.constant 0 : i32
    %c0_i32_0 = arith.constant 0 : i32
    %c0_i32_1 = arith.constant 0 : i32
    return %c0_i32, %c0_i32_0 : i32, i32
  }
  func.func @transform_2(%arg0: i32, %arg1: i32) -> (i32, i32) {
    %c0_i32 = arith.constant 0 : i32
    %c0_i32_0 = arith.constant 0 : i32
    %c0_i32_1 = arith.constant 0 : i32
    return %c0_i32, %c0_i32_0 : i32, i32
  }
  func.func @transform_3(%arg0: i32, %arg1: i32) -> (i32, i32) {
    %c0_i32 = arith.constant 0 : i32
    %c0_i32_0 = arith.constant 0 : i32
    %c0_i32_1 = arith.constant 0 : i32
    return %c0_i32, %c0_i32_0 : i32, i32
  }
  func.func @transform_4(%arg0: i32, %arg1: i32) -> (i32, i32) {
    %c0_i32 = arith.constant 0 : i32
    %c0_i32_0 = arith.constant 0 : i32
    %c0_i32_1 = arith.constant 0 : i32
    return %c0_i32, %c0_i32_0 : i32, i32
  }
  func.func @transform_5(%arg0: i32, %arg1: i32) -> (i32, i32) {
    %c0_i32 = arith.constant 0 : i32
    %c0_i32_0 = arith.constant 0 : i32
    %c0_i32_1 = arith.constant 0 : i32
    return %c0_i32, %c0_i32_0 : i32, i32
  }
  func.func @transform_6(%arg0: i32, %arg1: i32) -> (i32, i32) {
    %c0_i32 = arith.constant 0 : i32
    %c0_i32_0 = arith.constant 0 : i32
    %c0_i32_1 = arith.constant 0 : i32
    return %c0_i32, %c0_i32_0 : i32, i32
  }
  func.func @transform_7(%arg0: i32, %arg1: i32) -> (i32, i32) {
    %c0_i32 = arith.constant 0 : i32
    %c0_i32_0 = arith.constant 0 : i32
    %c0_i32_1 = arith.constant 0 : i32
    return %c0_i32, %c0_i32_0 : i32, i32
  }
  func.func @transform_8(%arg0: i32, %arg1: i32) -> (i32, i32, i32) {
    %c0_i32 = arith.constant 0 : i32
    %c0_i32_0 = arith.constant 0 : i32
    %c0_i32_1 = arith.constant 0 : i32
    return %arg1, %c0_i32, %c0_i32_0 : i32, i32, i32
  }
  func.func @transform_9(%arg0: i32, %arg1: i32) -> (i32, i32, i32) {
    %c0_i32 = arith.constant 0 : i32
    %c0_i32_0 = arith.constant 0 : i32
    %c0_i32_1 = arith.constant 0 : i32
    return %arg1, %c0_i32, %c0_i32_0 : i32, i32, i32
  }
  func.func @transform_10(%arg0: i32, %arg1: i32) -> (i32, i32, i32) {
    %c0_i32 = arith.constant 0 : i32
    %c0_i32_0 = arith.constant 0 : i32
    %c0_i32_1 = arith.constant 0 : i32
    return %arg1, %c0_i32, %c0_i32_0 : i32, i32, i32
  }
  func.func @transform_11(%arg0: i32, %arg1: i32) -> (i32, i32, i32) {
    %c0_i32 = arith.constant 0 : i32
    %c0_i32_0 = arith.constant 0 : i32
    %c0_i32_1 = arith.constant 0 : i32
    return %arg1, %c0_i32, %c0_i32_0 : i32, i32, i32
  }
  func.func @transform_12(%arg0: i32, %arg1: i32) -> (i32, i32, i32) {
    %c0_i32 = arith.constant 0 : i32
    %c0_i32_0 = arith.constant 0 : i32
    %c0_i32_1 = arith.constant 0 : i32
    return %arg1, %c0_i32, %c0_i32_0 : i32, i32, i32
  }
  func.func @transform_13(%arg0: i32, %arg1: i32) -> (i32, i32, i32) {
    %c0_i32 = arith.constant 0 : i32
    %c0_i32_0 = arith.constant 0 : i32
    %c0_i32_1 = arith.constant 0 : i32
    return %arg1, %c0_i32, %c0_i32_0 : i32, i32, i32
  }
  func.func @transform_14(%arg0: i32, %arg1: i32) -> (i32, i32, i32) {
    %c0_i32 = arith.constant 0 : i32
    %c0_i32_0 = arith.constant 0 : i32
    %c0_i32_1 = arith.constant 0 : i32
    return %arg1, %c0_i32, %c0_i32_0 : i32, i32, i32
  }
  func.func @transform_15(%arg0: i32, %arg1: i32) -> (i32, i32, i32) {
    %c0_i32 = arith.constant 0 : i32
    %c0_i32_0 = arith.constant 0 : i32
    %c0_i32_1 = arith.constant 0 : i32
    return %arg1, %c0_i32, %c0_i32_0 : i32, i32, i32
  }
  func.func @transform_16(%arg0: i32, %arg1: i32) -> (i32, i32, i32) {
    %c0_i32 = arith.constant 0 : i32
    %c0_i32_0 = arith.constant 0 : i32
    %c0_i32_1 = arith.constant 0 : i32
    return %arg1, %c0_i32, %c0_i32_0 : i32, i32, i32
  }
  func.func @transform_17(%arg0: i32, %arg1: i32) -> (i32, i32, i32) {
    %c0_i32 = arith.constant 0 : i32
    %c0_i32_0 = arith.constant 0 : i32
    %c0_i32_1 = arith.constant 0 : i32
    return %arg1, %c0_i32, %c0_i32_0 : i32, i32, i32
  }
  func.func @transform_18(%arg0: i32, %arg1: i32) -> (i32, i32) {
    %c0_i32 = arith.constant 0 : i32
    %c0_i32_0 = arith.constant 0 : i32
    return %arg0, %c0_i32 : i32, i32
  }
}

</mosaic_0001>

<llo_original>
// kernel: nmt_forward.1
$region0: #{nmt_forward.1}
  #allocation0 [shape = 'u32[]', space=smem, size = 0x4, offset = 0x4, fixed_abs, tag = 'smem constant byte address 0x4 - core index']
  #allocation1 [shape = 'u32[144,128]{1,0:T(1,128)}', space=vmem, size = 0x12000, scoped, tag = 'internal scratch']
  #allocation2 [shape = 'f32[8,32]{1,0:T(8,128)}', space=vmem, size = 0x1000, scoped, tag = 'scratch operand']
  %s0 = inlined_call_operand.vmem [shape: f32[16,32], index: 0, kind: input, shape index: {}]
  %s1 = inlined_call_operand.vmem [shape: f32[8,128], index: 1, kind: input, shape index: {}]
  %s2 = inlined_call_operand.vmem [shape: f32[32,32], index: 2, kind: input, shape index: {}]
  %s3 = inlined_call_operand.vmem [shape: f32[32,8], index: 3, kind: input, shape index: {}]
  %s4 = inlined_call_operand.vmem [shape: bf16[64,32], index: 4, kind: input, shape index: {}]
  %s5 = inlined_call_operand.vmem [shape: f32[1,32], index: 5, kind: input, shape index: {}]
  %s6 = inlined_call_operand.vmem [shape: f32[1,32], index: 6, kind: input, shape index: {}]
  %s7 = inlined_call_operand.vmem [shape: bf16[32,128], index: 7, kind: input, shape index: {}]
  %s8 = inlined_call_operand.vmem [shape: f32[2,1,32], index: 8, kind: input, shape index: {}]
  %s9 = inlined_call_operand.vmem [shape: f32[2,1,32], index: 9, kind: input, shape index: {}]
  %s10 = inlined_call_operand.vmem [shape: bf16[2,32,128], index: 10, kind: input, shape index: {}]
  %s11 = inlined_call_operand.vmem [shape: bf16[2,32,32], index: 11, kind: input, shape index: {}]
  %s12 = inlined_call_operand.vmem [shape: bf16[2,32,32], index: 12, kind: input, shape index: {}]
  %s13 = inlined_call_operand.vmem [shape: bf16[2,32,64], index: 13, kind: input, shape index: {}]
  %s14 = inlined_call_operand.vmem [shape: bf16[2,32,64], index: 14, kind: input, shape index: {}]
  %s15 = inlined_call_operand.vmem [shape: f32[2,1,64], index: 15, kind: input, shape index: {}]
  %s16 = inlined_call_operand.vmem [shape: bf16[2,32,128], index: 16, kind: input, shape index: {}]
  %s17 = inlined_call_operand.vmem [shape: bf16[2,128,32], index: 17, kind: input, shape index: {}]
  %s18 = inlined_call_operand.hbm [shape: f32[16,128], index: 18, kind: output, shape index: {}]
  %s19 = sld [smem:[#allocation0]]
  $region113: #{nmt_forward.1} parent=0
    _
  %s21 = ssub.s32 1, %s19
  %s22 = scalar_select 0, %s21, %s19
  $region1: #{nmt_forward.1} parent=0
    #allocation3 [shape = 'u8[8192]{0}', space=vmem, size = 0x2000, scoped, tag = 'output window, operand 0']
    #allocation4 [shape = 's32[2]{0}', space=sflag, size = 0x8, scoped, tag = 'scoped memory for nmt_forward.1']
    %23 = vsyncpa [#allocation4], 0
    %s24 = scalar_lea.sflag [#allocation4], 1
    %25 = vsyncpa %s24, 0
    loop: start=0, step=1, limit=6
    $region2: #{nmt_forward.1} parent=1 // loop_pre_header
      _
    $region3: #{nmt_forward.1} parent=1 // loop_header
      %s27 = sphi 0, %s31
      %p28 = scmp.ge.s32.totalorder %s27, 6
      %s34 = sphi 0, %s46
      %s35 = sphi 0, %s42
      %s36 = sphi 0, %s34
      %s37 = sphi 0, %s35
      %s38 = sphi 0, %s36
      %s39 = sphi 0, %s37
      %s49 = sphi 0, %s51
      %s52 = sphi 0, %s49
      %s53 = sphi 0, %s52
      %s69 = sphi 0, %s53
      %s73 = sphi 0, %s73
      %s75 = sphi 0, %s73
      %s76 = sphi 0, %s75
      %s90 = sphi 0, %s76
      %s94 = sphi 0, %s94
      %s96 = sphi 0, %s94
      %s97 = sphi 0, %s96
      %s111 = sphi 0, %s97
      %s115 = sphi 0, %s115
      %s117 = sphi 0, %s115
      %s118 = sphi 0, %s117
      %s132 = sphi 0, %s118
      %s136 = sphi 0, %s136
      %s138 = sphi 0, %s136
      %s139 = sphi 0, %s138
      %s153 = sphi 0, %s139
      %s157 = sphi 0, %s157
      %s159 = sphi 0, %s157
      %s160 = sphi 0, %s159
      %s174 = sphi 0, %s160
      %s178 = sphi 0, %s178
      %s180 = sphi 0, %s178
      %s181 = sphi 0, %s180
      %s195 = sphi 0, %s181
      %s199 = sphi 0, %s199
      %s201 = sphi 0, %s199
      %s202 = sphi 0, %s201
      %s216 = sphi 0, %s202
      %s222 = sphi 0, %s224
      %s225 = sphi 0, %s222
      %s226 = sphi 0, %s225
      %s242 = sphi 0, %s226
      %s248 = sphi 0, %s250
      %s251 = sphi 0, %s248
      %s252 = sphi 0, %s251
      %s268 = sphi 0, %s252
      %s274 = sphi 0, %s276
      %s277 = sphi 0, %s274
      %s278 = sphi 0, %s277
      %s294 = sphi 0, %s278
      %s300 = sphi 0, %s302
      %s303 = sphi 0, %s300
      %s304 = sphi 0, %s303
      %s320 = sphi 0, %s304
      %s326 = sphi 0, %s328
      %s329 = sphi 0, %s326
      %s330 = sphi 0, %s329
      %s346 = sphi 0, %s330
      %s352 = sphi 0, %s354
      %s355 = sphi 0, %s352
      %s356 = sphi 0, %s355
      %s372 = sphi 0, %s356
      %s378 = sphi 0, %s380
      %s381 = sphi 0, %s378
      %s382 = sphi 0, %s381
      %s398 = sphi 0, %s382
      %s404 = sphi 0, %s406
      %s407 = sphi 0, %s404
      %s408 = sphi 0, %s407
      %s424 = sphi 0, %s408
      %s430 = sphi 0, %s432
      %s433 = sphi 0, %s430
      %s434 = sphi 0, %s433
      %s450 = sphi 0, %s434
      %s456 = sphi 0, %s458
      %s459 = sphi 0, %s456
      %s460 = sphi 0, %s459
      %s476 = sphi 0, %s460
      %s482 = sphi 0, %s484
      %s485 = sphi 0, %s482
      %s486 = sphi 0, %s485
      %s502 = sphi 0, %s486
    $region4: #{nmt_forward.1} parent=1 // loop_header_branch
      %30 = sbr.rel (%p28) target = $region8
    $region5: #{nmt_forward.1} parent=1 // loop_body
      %s32 = ssub.s32 %s27, 1
      %s33 = ssub.s32 %s27, 2
      %s40 = sadd.s32 1, %s35
      %p41 = scmp.ge.s32.totalorder %s40, 2
      %s42 = scalar_select %p41, 0, %s40
      %s43 = sadd.s32 1, %s34
      %s44 = scalar_select %p41, %s43, %s34
      %p45 = scmp.ge.s32.totalorder %s44, 2
      %s46 = scalar_select %p45, 0, %s44
      %s47 = ssub.s32 %s34, %s46
      %p48 = scmp.eq.s32.totalorder %s47, 0
      %s50 = sadd.s32 %s49, 1
      %s51 = scalar_select %p48, %s49, %s50
      %p54 = pneg %p48
      %p55 = scmp.eq.s32.totalorder %s27, 3
      %p56 = por %p54, %p55
      %p57 = scmp.ne.s32.totalorder %s49, %s52
      %p58 = scmp.eq.s32.totalorder %s27, 0
      %p59 = por %p57, %p58
      %p60 = scmp.ne.s32.totalorder %s49, %s52
      %p61 = scmp.eq.s32.totalorder %s32, 3
      %p62 = por %p60, %p61
      %p63 = scmp.ne.s32.totalorder %s52, %s53
      %p64 = scmp.eq.s32.totalorder %s32, 0
      %p65 = por %p63, %p64
      %p66 = scmp.ne.s32.totalorder %s52, %s53
      %p67 = scmp.eq.s32.totalorder %s33, 3
      %p68 = por %p66, %p67
      %p70 = scmp.ne.s32.totalorder %s53, %s69
      %p71 = scmp.eq.s32.totalorder %s33, 0
      %p72 = por %p70, %p71
      %s74 = sadd.s32 %s73, 1
      %p77 = scmp.eq.s32.totalorder %s27, 3
      %p78 = scmp.ne.s32.totalorder %s73, %s75
      %p79 = scmp.eq.s32.totalorder %s27, 0
      %p80 = por %p78, %p79
      %p81 = scmp.ne.s32.totalorder %s73, %s75
      %p82 = scmp.eq.s32.totalorder %s32, 3
      %p83 = por %p81, %p82
      %p84 = scmp.ne.s32.totalorder %s75, %s76
      %p85 = scmp.eq.s32.totalorder %s32, 0
      %p86 = por %p84, %p85
      %p87 = scmp.ne.s32.totalorder %s75, %s76
      %p88 = scmp.eq.s32.totalorder %s33, 3
      %p89 = por %p87, %p88
      %p91 = scmp.ne.s32.totalorder %s76, %s90
      %p92 = scmp.eq.s32.totalorder %s33, 0
      %p93 = por %p91, %p92
      %s95 = sadd.s32 %s94, 1
      %p98 = scmp.eq.s32.totalorder %s27, 3
      %p99 = scmp.ne.s32.totalorder %s94, %s96
      %p100 = scmp.eq.s32.totalorder %s27, 0
      %p101 = por %p99, %p100
      %p102 = scmp.ne.s32.totalorder %s94, %s96
      %p103 = scmp.eq.s32.totalorder %s32, 3
      %p104 = por %p102, %p103
      %p105 = scmp.ne.s32.totalorder %s96, %s97
      %p106 = scmp.eq.s32.totalorder %s32, 0
      %p107 = por %p105, %p106
      %p108 = scmp.ne.s32.totalorder %s96, %s97
      %p109 = scmp.eq.s32.totalorder %s33, 3
      %p110 = por %p108, %p109
      %p112 = scmp.ne.s32.totalorder %s97, %s111
      %p113 = scmp.eq.s32.totalorder %s33, 0
      %p114 = por %p112, %p113
      %s116 = sadd.s32 %s115, 1
      %p119 = scmp.eq.s32.totalorder %s27, 3
      %p120 = scmp.ne.s32.totalorder %s115, %s117
      %p121 = scmp.eq.s32.totalorder %s27, 0
      %p122 = por %p120, %p121
      %p123 = scmp.ne.s32.totalorder %s115, %s117
      %p124 = scmp.eq.s32.totalorder %s32, 3
      %p125 = por %p123, %p124
      %p126 = scmp.ne.s32.totalorder %s117, %s118
      %p127 = scmp.eq.s32.totalorder %s32, 0
      %p128 = por %p126, %p127
      %p129 = scmp.ne.s32.totalorder %s117, %s118
      %p130 = scmp.eq.s32.totalorder %s33, 3
      %p131 = por %p129, %p130
      %p133 = scmp.ne.s32.totalorder %s118, %s132
      %p134 = scmp.eq.s32.totalorder %s33, 0
      %p135 = por %p133, %p134
      %s137 = sadd.s32 %s136, 1
      %p140 = scmp.eq.s32.totalorder %s27, 3
      %p141 = scmp.ne.s32.totalorder %s136, %s138
      %p142 = scmp.eq.s32.totalorder %s27, 0
      %p143 = por %p141, %p142
      %p144 = scmp.ne.s32.totalorder %s136, %s138
      %p145 = scmp.eq.s32.totalorder %s32, 3
      %p146 = por %p144, %p145
      %p147 = scmp.ne.s32.totalorder %s138, %s139
      %p148 = scmp.eq.s32.totalorder %s32, 0
      %p149 = por %p147, %p148
      %p150 = scmp.ne.s32.totalorder %s138, %s139
      %p151 = scmp.eq.s32.totalorder %s33, 3
      %p152 = por %p150, %p151
      %p154 = scmp.ne.s32.totalorder %s139, %s153
      %p155 = scmp.eq.s32.totalorder %s33, 0
      %p156 = por %p154, %p155
      %s158 = sadd.s32 %s157, 1
      %p161 = scmp.eq.s32.totalorder %s27, 3
      %p162 = scmp.ne.s32.totalorder %s157, %s159
      %p163 = scmp.eq.s32.totalorder %s27, 0
      %p164 = por %p162, %p163
      %p165 = scmp.ne.s32.totalorder %s157, %s159
      %p166 = scmp.eq.s32.totalorder %s32, 3
      %p167 = por %p165, %p166
      %p168 = scmp.ne.s32.totalorder %s159, %s160
      %p169 = scmp.eq.s32.totalorder %s32, 0
      %p170 = por %p168, %p169
      %p171 = scmp.ne.s32.totalorder %s159, %s160
      %p172 = scmp.eq.s32.totalorder %s33, 3
      %p173 = por %p171, %p172
      %p175 = scmp.ne.s32.totalorder %s160, %s174
      %p176 = scmp.eq.s32.totalorder %s33, 0
      %p177 = por %p175, %p176
      %s179 = sadd.s32 %s178, 1
      %p182 = scmp.eq.s32.totalorder %s27, 3
      %p183 = scmp.ne.s32.totalorder %s178, %s180
      %p184 = scmp.eq.s32.totalorder %s27, 0
      %p185 = por %p183, %p184
      %p186 = scmp.ne.s32.totalorder %s178, %s180
      %p187 = scmp.eq.s32.totalorder %s32, 3
      %p188 = por %p186, %p187
      %p189 = scmp.ne.s32.totalorder %s180, %s181
      %p190 = scmp.eq.s32.totalorder %s32, 0
      %p191 = por %p189, %p190
      %p192 = scmp.ne.s32.totalorder %s180, %s181
      %p193 = scmp.eq.s32.totalorder %s33, 3
      %p194 = por %p192, %p193
      %p196 = scmp.ne.s32.totalorder %s181, %s195
      %p197 = scmp.eq.s32.totalorder %s33, 0
      %p198 = por %p196, %p197
      %s200 = sadd.s32 %s199, 1
      %p203 = scmp.eq.s32.totalorder %s27, 3
      %p204 = scmp.ne.s32.totalorder %s199, %s201
      %p205 = scmp.eq.s32.totalorder %s27, 0
      %p206 = por %p204, %p205
      %p207 = scmp.ne.s32.totalorder %s199, %s201
      %p208 = scmp.eq.s32.totalorder %s32, 3
      %p209 = por %p207, %p208
      %p210 = scmp.ne.s32.totalorder %s201, %s202
      %p211 = scmp.eq.s32.totalorder %s32, 0
      %p212 = por %p210, %p211
      %p213 = scmp.ne.s32.totalorder %s201, %s202
      %p214 = scmp.eq.s32.totalorder %s33, 3
      %p215 = por %p213, %p214
      %p217 = scmp.ne.s32.totalorder %s202, %s216
      %p218 = scmp.eq.s32.totalorder %s33, 0
      %p219 = por %p217, %p218
      %s220 = ssub.s32 %s35, %s42
      %p221 = scmp.eq.s32.totalorder %s220, 0
      %s223 = sadd.s32 %s222, 1
      %s224 = scalar_select %p221, %s222, %s223
      %p227 = pneg %p221
      %p228 = scmp.eq.s32.totalorder %s27, 3
      %p229 = por %p227, %p228
      %p230 = scmp.ne.s32.totalorder %s222, %s225
      %p231 = scmp.eq.s32.totalorder %s27, 0
      %p232 = por %p230, %p231
      %p233 = scmp.ne.s32.totalorder %s222, %s225
      %p234 = scmp.eq.s32.totalorder %s32, 3
      %p235 = por %p233, %p234
      %p236 = scmp.ne.s32.totalorder %s225, %s226
      %p237 = scmp.eq.s32.totalorder %s32, 0
      %p238 = por %p236, %p237
      %p239 = scmp.ne.s32.totalorder %s225, %s226
      %p240 = scmp.eq.s32.totalorder %s33, 3
      %p241 = por %p239, %p240
      %p243 = scmp.ne.s32.totalorder %s226, %s242
      %p244 = scmp.eq.s32.totalorder %s33, 0
      %p245 = por %p243, %p244
      %s246 = ssub.s32 %s35, %s42
      %p247 = scmp.eq.s32.totalorder %s246, 0
      %s249 = sadd.s32 %s248, 1
      %s250 = scalar_select %p247, %s248, %s249
      %p253 = pneg %p247
      %p254 = scmp.eq.s32.totalorder %s27, 3
      %p255 = por %p253, %p254
      %p256 = scmp.ne.s32.totalorder %s248, %s251
      %p257 = scmp.eq.s32.totalorder %s27, 0
      %p258 = por %p256, %p257
      %p259 = scmp.ne.s32.totalorder %s248, %s251
      %p260 = scmp.eq.s32.totalorder %s32, 3
      %p261 = por %p259, %p260
      %p262 = scmp.ne.s32.totalorder %s251, %s252
      %p263 = scmp.eq.s32.totalorder %s32, 0
      %p264 = por %p262, %p263
      %p265 = scmp.ne.s32.totalorder %s251, %s252
      %p266 = scmp.eq.s32.totalorder %s33, 3
      %p267 = por %p265, %p266
      %p269 = scmp.ne.s32.totalorder %s252, %s268
      %p270 = scmp.eq.s32.totalorder %s33, 0
      %p271 = por %p269, %p270
      %s272 = ssub.s32 %s35, %s42
      %p273 = scmp.eq.s32.totalorder %s272, 0
      %s275 = sadd.s32 %s274, 1
      %s276 = scalar_select %p273, %s274, %s275
      %p279 = pneg %p273
      %p280 = scmp.eq.s32.totalorder %s27, 3
      %p281 = por %p279, %p280
      %p282 = scmp.ne.s32.totalorder %s274, %s277
      %p283 = scmp.eq.s32.totalorder %s27, 0
      %p284 = por %p282, %p283
      %p285 = scmp.ne.s32.totalorder %s274, %s277
      %p286 = scmp.eq.s32.totalorder %s32, 3
      %p287 = por %p285, %p286
      %p288 = scmp.ne.s32.totalorder %s277, %s278
      %p289 = scmp.eq.s32.totalorder %s32, 0
      %p290 = por %p288, %p289
      %p291 = scmp.ne.s32.totalorder %s277, %s278
      %p292 = scmp.eq.s32.totalorder %s33, 3
      %p293 = por %p291, %p292
      %p295 = scmp.ne.s32.totalorder %s278, %s294
      %p296 = scmp.eq.s32.totalorder %s33, 0
      %p297 = por %p295, %p296
      %s298 = ssub.s32 %s35, %s42
      %p299 = scmp.eq.s32.totalorder %s298, 0
      %s301 = sadd.s32 %s300, 1
      %s302 = scalar_select %p299, %s300, %s301
      %p305 = pneg %p299
      %p306 = scmp.eq.s32.totalorder %s27, 3
      %p307 = por %p305, %p306
      %p308 = scmp.ne.s32.totalorder %s300, %s303
      %p309 = scmp.eq.s32.totalorder %s27, 0
      %p310 = por %p308, %p309
      %p311 = scmp.ne.s32.totalorder %s300, %s303
      %p312 = scmp.eq.s32.totalorder %s32, 3
      %p313 = por %p311, %p312
      %p314 = scmp.ne.s32.totalorder %s303, %s304
      %p315 = scmp.eq.s32.totalorder %s32, 0
      %p316 = por %p314, %p315
      %p317 = scmp.ne.s32.totalorder %s303, %s304
      %p318 = scmp.eq.s32.totalorder %s33, 3
      %p319 = por %p317, %p318
      %p321 = scmp.ne.s32.totalorder %s304, %s320
      %p322 = scmp.eq.s32.totalorder %s33, 0
      %p323 = por %p321, %p322
      %s324 = ssub.s32 %s35, %s42
      %p325 = scmp.eq.s32.totalorder %s324, 0
      %s327 = sadd.s32 %s326, 1
      %s328 = scalar_select %p325, %s326, %s327
      %p331 = pneg %p325
      %p332 = scmp.eq.s32.totalorder %s27, 3
      %p333 = por %p331, %p332
      %p334 = scmp.ne.s32.totalorder %s326, %s329
      %p335 = scmp.eq.s32.totalorder %s27, 0
      %p336 = por %p334, %p335
      %p337 = scmp.ne.s32.totalorder %s326, %s329
      %p338 = scmp.eq.s32.totalorder %s32, 3
      %p339 = por %p337, %p338
      %p340 = scmp.ne.s32.totalorder %s329, %s330
      %p341 = scmp.eq.s32.totalorder %s32, 0
      %p342 = por %p340, %p341
      %p343 = scmp.ne.s32.totalorder %s329, %s330
      %p344 = scmp.eq.s32.totalorder %s33, 3
      %p345 = por %p343, %p344
      %p347 = scmp.ne.s32.totalorder %s330, %s346
      %p348 = scmp.eq.s32.totalorder %s33, 0
      %p349 = por %p347, %p348
      %s350 = ssub.s32 %s35, %s42
      %p351 = scmp.eq.s32.totalorder %s350, 0
      %s353 = sadd.s32 %s352, 1
      %s354 = scalar_select %p351, %s352, %s353
      %p357 = pneg %p351
      %p358 = scmp.eq.s32.totalorder %s27, 3
      %p359 = por %p357, %p358
      %p360 = scmp.ne.s32.totalorder %s352, %s355
      %p361 = scmp.eq.s32.totalorder %s27, 0
      %p362 = por %p360, %p361
      %p363 = scmp.ne.s32.totalorder %s352, %s355
      %p364 = scmp.eq.s32.totalorder %s32, 3
      %p365 = por %p363, %p364
      %p366 = scmp.ne.s32.totalorder %s355, %s356
      %p367 = scmp.eq.s32.totalorder %s32, 0
      %p368 = por %p366, %p367
      %p369 = scmp.ne.s32.totalorder %s355, %s356
      %p370 = scmp.eq.s32.totalorder %s33, 3
      %p371 = por %p369, %p370
      %p373 = scmp.ne.s32.totalorder %s356, %s372
      %p374 = scmp.eq.s32.totalorder %s33, 0
      %p375 = por %p373, %p374
      %s376 = ssub.s32 %s35, %s42
      %p377 = scmp.eq.s32.totalorder %s376, 0
      %s379 = sadd.s32 %s378, 1
      %s380 = scalar_select %p377, %s378, %s379
      %p383 = pneg %p377
      %p384 = scmp.eq.s32.totalorder %s27, 3
      %p385 = por %p383, %p384
      %p386 = scmp.ne.s32.totalorder %s378, %s381
      %p387 = scmp.eq.s32.totalorder %s27, 0
      %p388 = por %p386, %p387
      %p389 = scmp.ne.s32.totalorder %s378, %s381
      %p390 = scmp.eq.s32.totalorder %s32, 3
      %p391 = por %p389, %p390
      %p392 = scmp.ne.s32.totalorder %s381, %s382
      %p393 = scmp.eq.s32.totalorder %s32, 0
      %p394 = por %p392, %p393
      %p395 = scmp.ne.s32.totalorder %s381, %s382
      %p396 = scmp.eq.s32.totalorder %s33, 3
      %p397 = por %p395, %p396
      %p399 = scmp.ne.s32.totalorder %s382, %s398
      %p400 = scmp.eq.s32.totalorder %s33, 0
      %p401 = por %p399, %p400
      %s402 = ssub.s32 %s35, %s42
      %p403 = scmp.eq.s32.totalorder %s402, 0
      %s405 = sadd.s32 %s404, 1
      %s406 = scalar_select %p403, %s404, %s405
      %p409 = pneg %p403
      %p410 = scmp.eq.s32.totalorder %s27, 3
      %p411 = por %p409, %p410
      %p412 = scmp.ne.s32.totalorder %s404, %s407
      %p413 = scmp.eq.s32.totalorder %s27, 0
      %p414 = por %p412, %p413
      %p415 = scmp.ne.s32.totalorder %s404, %s407
      %p416 = scmp.eq.s32.totalorder %s32, 3
      %p417 = por %p415, %p416
      %p418 = scmp.ne.s32.totalorder %s407, %s408
      %p419 = scmp.eq.s32.totalorder %s32, 0
      %p420 = por %p418, %p419
      %p421 = scmp.ne.s32.totalorder %s407, %s408
      %p422 = scmp.eq.s32.totalorder %s33, 3
      %p423 = por %p421, %p422
      %p425 = scmp.ne.s32.totalorder %s408, %s424
      %p426 = scmp.eq.s32.totalorder %s33, 0
      %p427 = por %p425, %p426
      %s428 = ssub.s32 %s35, %s42
      %p429 = scmp.eq.s32.totalorder %s428, 0
      %s431 = sadd.s32 %s430, 1
      %s432 = scalar_select %p429, %s430, %s431
      %p435 = pneg %p429
      %p436 = scmp.eq.s32.totalorder %s27, 3
      %p437 = por %p435, %p436
      %p438 = scmp.ne.s32.totalorder %s430, %s433
      %p439 = scmp.eq.s32.totalorder %s27, 0
      %p440 = por %p438, %p439
      %p441 = scmp.ne.s32.totalorder %s430, %s433
      %p442 = scmp.eq.s32.totalorder %s32, 3
      %p443 = por %p441, %p442
      %p444 = scmp.ne.s32.totalorder %s433, %s434
      %p445 = scmp.eq.s32.totalorder %s32, 0
      %p446 = por %p444, %p445
      %p447 = scmp.ne.s32.totalorder %s433, %s434
      %p448 = scmp.eq.s32.totalorder %s33, 3
      %p449 = por %p447, %p448
      %p451 = scmp.ne.s32.totalorder %s434, %s450
      %p452 = scmp.eq.s32.totalorder %s33, 0
      %p453 = por %p451, %p452
      %s454 = ssub.s32 %s35, %s42
      %p455 = scmp.eq.s32.totalorder %s454, 0
      %s457 = sadd.s32 %s456, 1
      %s458 = scalar_select %p455, %s456, %s457
      %p461 = pneg %p455
      %p462 = scmp.eq.s32.totalorder %s27, 3
      %p463 = por %p461, %p462
      %p464 = scmp.ne.s32.totalorder %s456, %s459
      %p465 = scmp.eq.s32.totalorder %s27, 0
      %p466 = por %p464, %p465
      %p467 = scmp.ne.s32.totalorder %s456, %s459
      %p468 = scmp.eq.s32.totalorder %s32, 3
      %p469 = por %p467, %p468
      %p470 = scmp.ne.s32.totalorder %s459, %s460
      %p471 = scmp.eq.s32.totalorder %s32, 0
      %p472 = por %p470, %p471
      %p473 = scmp.ne.s32.totalorder %s459, %s460
      %p474 = scmp.eq.s32.totalorder %s33, 3
      %p475 = por %p473, %p474
      %p477 = scmp.ne.s32.totalorder %s460, %s476
      %p478 = scmp.eq.s32.totalorder %s33, 0
      %p479 = por %p477, %p478
      %s480 = ssub.s32 %s34, %s46
      %p481 = scmp.eq.s32.totalorder %s480, 0
      %s483 = sadd.s32 %s482, 1
      %s484 = scalar_select %p481, %s482, %s483
      %p487 = pneg %p481
      %p488 = scmp.eq.s32.totalorder %s27, 3
      %p489 = por %p487, %p488
      %p490 = scmp.ne.s32.totalorder %s482, %s485
      %p491 = scmp.eq.s32.totalorder %s27, 0
      %p492 = por %p490, %p491
      %p493 = scmp.ne.s32.totalorder %s482, %s485
      %p494 = scmp.eq.s32.totalorder %s32, 3
      %p495 = por %p493, %p494
      %p496 = scmp.ne.s32.totalorder %s485, %s486
      %p497 = scmp.eq.s32.totalorder %s32, 0
      %p498 = por %p496, %p497
      %p499 = scmp.ne.s32.totalorder %s485, %s486
      %p500 = scmp.eq.s32.totalorder %s33, 3
      %p501 = por %p499, %p500
      %p503 = scmp.ne.s32.totalorder %s486, %s502
      %p504 = scmp.eq.s32.totalorder %s33, 0
      %p505 = por %p503, %p504
      %p506 = scmp.le.s32.totalorder 1, %s27
      %p507 = scmp.lt.s32.totalorder %s27, 5
      %p508 = pnand %p506, %p507
      %p509 = pneg %p508
      // Predicated region
      $region9: #{nmt_forward.1} parent=5 // pred_check
        _
      $region10: #{nmt_forward.1} parent=5 // pred_check_branch
        %511 = sbr.rel (%p508) target = $region12
      $region11: #{nmt_forward.1} parent=5 // pred_region
        %s512 = ssub.s32 %s27, 1
        // Predicated region
        $region13: #{nmt_forward.1} parent=11 // pred_check
          %p513 = pneg %p86
        $region14: #{nmt_forward.1} parent=11 // pred_check_branch
          %515 = sbr.rel (%p513) target = $region16
        $region15: #{nmt_forward.1} parent=11 // pred_region
          _
        $region16: #{nmt_forward.1} parent=11 // pred_fallthru
          _
        // Predicated region
        $region17: #{nmt_forward.1} parent=11 // pred_check
          %p516 = pneg %p107
        $region18: #{nmt_forward.1} parent=11 // pred_check_branch
          %518 = sbr.rel (%p516) target = $region20
        $region19: #{nmt_forward.1} parent=11 // pred_region
          _
        $region20: #{nmt_forward.1} parent=11 // pred_fallthru
          _
        // Predicated region
        $region21: #{nmt_forward.1} parent=11 // pred_check
          %p519 = pneg %p128
        $region22: #{nmt_forward.1} parent=11 // pred_check_branch
          %521 = sbr.rel (%p519) target = $region24
        $region23: #{nmt_forward.1} parent=11 // pred_region
          _
        $region24: #{nmt_forward.1} parent=11 // pred_fallthru
          _
        // Predicated region
        $region25: #{nmt_forward.1} parent=11 // pred_check
          %p522 = pneg %p149
        $region26: #{nmt_forward.1} parent=11 // pred_check_branch
          %524 = sbr.rel (%p522) target = $region28
        $region27: #{nmt_forward.1} parent=11 // pred_region
          _
        $region28: #{nmt_forward.1} parent=11 // pred_fallthru
          _
        // Predicated region
        $region29: #{nmt_forward.1} parent=11 // pred_check
          %p525 = pneg %p170
        $region30: #{nmt_forward.1} parent=11 // pred_check_branch
          %527 = sbr.rel (%p525) target = $region32
        $region31: #{nmt_forward.1} parent=11 // pred_region
          _
        $region32: #{nmt_forward.1} parent=11 // pred_fallthru
          _
        // Predicated region
        $region33: #{nmt_forward.1} parent=11 // pred_check
          %p528 = pneg %p191
        $region34: #{nmt_forward.1} parent=11 // pred_check_branch
          %530 = sbr.rel (%p528) target = $region36
        $region35: #{nmt_forward.1} parent=11 // pred_region
          _
        $region36: #{nmt_forward.1} parent=11 // pred_fallthru
          _
        // Predicated region
        $region37: #{nmt_forward.1} parent=11 // pred_check
          %p531 = pneg %p212
        $region38: #{nmt_forward.1} parent=11 // pred_check_branch
          %533 = sbr.rel (%p531) target = $region40
        $region39: #{nmt_forward.1} parent=11 // pred_region
          _
        $region40: #{nmt_forward.1} parent=11 // pred_fallthru
          _
      $region12: #{nmt_forward.1} parent=5 // pred_fallthru
        _
      %p534 = scmp.lt.s32.totalorder %s27, 4
      // Predicated region
      $region41: #{nmt_forward.1} parent=5 // pred_check
        %p535 = pneg %p534
      $region42: #{nmt_forward.1} parent=5 // pred_check_branch
        %537 = sbr.rel (%p535) target = $region44
      $region43: #{nmt_forward.1} parent=5 // pred_region
        // Predicated region
        $region45: #{nmt_forward.1} parent=43 // pred_check
          %p538 = pneg %p59
        $region46: #{nmt_forward.1} parent=43 // pred_check_branch
          %540 = sbr.rel (%p538) target = $region48
        $region47: #{nmt_forward.1} parent=43 // pred_region
          %p541 = scmp.lt.s32.totalorder %s34, 1
          %s542 = scalar_select %p541, %s34, 1
          %s543 = smul.addr %s542, 8
          %s544 = scalar_lea.vmem %s0, %s543
        $region48: #{nmt_forward.1} parent=43 // pred_fallthru
          _
        // Predicated region
        $region49: #{nmt_forward.1} parent=43 // pred_check
          %p545 = pneg %p232
        $region50: #{nmt_forward.1} parent=43 // pred_check_branch
          %547 = sbr.rel (%p545) target = $region52
        $region51: #{nmt_forward.1} parent=43 // pred_region
          %p548 = scmp.lt.s32.totalorder %s35, 1
          %s549 = scalar_select %p548, %s35, 1
          %s550 = scalar_lea.vmem %s8, %s549
        $region52: #{nmt_forward.1} parent=43 // pred_fallthru
          _
        // Predicated region
        $region53: #{nmt_forward.1} parent=43 // pred_check
          %p551 = pneg %p258
        $region54: #{nmt_forward.1} parent=43 // pred_check_branch
          %553 = sbr.rel (%p551) target = $region56
        $region55: #{nmt_forward.1} parent=43 // pred_region
          %p554 = scmp.lt.s32.totalorder %s35, 1
          %s555 = scalar_select %p554, %s35, 1
          %s556 = scalar_lea.vmem %s9, %s555
        $region56: #{nmt_forward.1} parent=43 // pred_fallthru
          _
        // Predicated region
        $region57: #{nmt_forward.1} parent=43 // pred_check
          %p557 = pneg %p284
        $region58: #{nmt_forward.1} parent=43 // pred_check_branch
          %559 = sbr.rel (%p557) target = $region60
        $region59: #{nmt_forward.1} parent=43 // pred_region
          %p560 = scmp.lt.s32.totalorder %s35, 1
          %s561 = scalar_select %p560, %s35, 1
          %s562 = smul.addr %s561, 4
          %s563 = smul.addr %s562, 4
          %s564 = scalar_lea.vmem %s10, %s563
        $region60: #{nmt_forward.1} parent=43 // pred_fallthru
          _
        // Predicated region
        $region61: #{nmt_forward.1} parent=43 // pred_check
          %p565 = pneg %p310
        $region62: #{nmt_forward.1} parent=43 // pred_check_branch
          %567 = sbr.rel (%p565) target = $region64
        $region63: #{nmt_forward.1} parent=43 // pred_region
          %p568 = scmp.lt.s32.totalorder %s35, 1
          %s569 = scalar_select %p568, %s35, 1
          %s570 = smul.addr %s569, 4
          %s571 = smul.addr %s570, 4
          %s572 = scalar_lea.vmem %s11, %s571
        $region64: #{nmt_forward.1} parent=43 // pred_fallthru
          _
        // Predicated region
        $region65: #{nmt_forward.1} parent=43 // pred_check
          %p573 = pneg %p336
        $region66: #{nmt_forward.1} parent=43 // pred_check_branch
          %575 = sbr.rel (%p573) target = $region68
        $region67: #{nmt_forward.1} parent=43 // pred_region
          %p576 = scmp.lt.s32.totalorder %s35, 1
          %s577 = scalar_select %p576, %s35, 1
          %s578 = smul.addr %s577, 4
          %s579 = smul.addr %s578, 4
          %s580 = scalar_lea.vmem %s12, %s579
        $region68: #{nmt_forward.1} parent=43 // pred_fallthru
          _
        // Predicated region
        $region69: #{nmt_forward.1} parent=43 // pred_check
          %p581 = pneg %p362
        $region70: #{nmt_forward.1} parent=43 // pred_check_branch
          %583 = sbr.rel (%p581) target = $region72
        $region71: #{nmt_forward.1} parent=43 // pred_region
          %p584 = scmp.lt.s32.totalorder %s35, 1
          %s585 = scalar_select %p584, %s35, 1
          %s586 = smul.addr %s585, 4
          %s587 = smul.addr %s586, 4
          %s588 = scalar_lea.vmem %s13, %s587
        $region72: #{nmt_forward.1} parent=43 // pred_fallthru
          _
        // Predicated region
        $region73: #{nmt_forward.1} parent=43 // pred_check
          %p589 = pneg %p388
        $region74: #{nmt_forward.1} parent=43 // pred_check_branch
          %591 = sbr.rel (%p589) target = $region76
        $region75: #{nmt_forward.1} parent=43 // pred_region
          %p592 = scmp.lt.s32.totalorder %s35, 1
          %s593 = scalar_select %p592, %s35, 1
          %s594 = smul.addr %s593, 4
          %s595 = smul.addr %s594, 4
          %s596 = scalar_lea.vmem %s14, %s595
        $region76: #{nmt_forward.1} parent=43 // pred_fallthru
          _
        // Predicated region
        $region77: #{nmt_forward.1} parent=43 // pred_check
          %p597 = pneg %p414
        $region78: #{nmt_forward.1} parent=43 // pred_check_branch
          %599 = sbr.rel (%p597) target = $region80
        $region79: #{nmt_forward.1} parent=43 // pred_region
          %p600 = scmp.lt.s32.totalorder %s35, 1
          %s601 = scalar_select %p600, %s35, 1
          %s602 = scalar_lea.vmem %s15, %s601
        $region80: #{nmt_forward.1} parent=43 // pred_fallthru
          _
        // Predicated region
        $region81: #{nmt_forward.1} parent=43 // pred_check
          %p603 = pneg %p440
        $region82: #{nmt_forward.1} parent=43 // pred_check_branch
          %605 = sbr.rel (%p603) target = $region84
        $region83: #{nmt_forward.1} parent=43 // pred_region
          %p606 = scmp.lt.s32.totalorder %s35, 1
          %s607 = scalar_select %p606, %s35, 1
          %s608 = smul.addr %s607, 4
          %s609 = smul.addr %s608, 4
          %s610 = scalar_lea.vmem %s16, %s609
        $region84: #{nmt_forward.1} parent=43 // pred_fallthru
          _
        // Predicated region
        $region85: #{nmt_forward.1} parent=43 // pred_check
          %p611 = pneg %p466
        $region86: #{nmt_forward.1} parent=43 // pred_check_branch
          %613 = sbr.rel (%p611) target = $region88
        $region87: #{nmt_forward.1} parent=43 // pred_region
          %p614 = scmp.lt.s32.totalorder %s35, 1
          %s615 = scalar_select %p614, %s35, 1
          %s616 = smul.addr %s615, 16
          %s617 = smul.addr %s616, 4
          %s618 = scalar_lea.vmem %s17, %s617
        $region88: #{nmt_forward.1} parent=43 // pred_fallthru
          _
      $region44: #{nmt_forward.1} parent=5 // pred_fallthru
        _
      %p619 = scmp.le.s32.totalorder 1, %s27
      %p620 = scmp.lt.s32.totalorder %s27, 5
      %p621 = pnand %p619, %p620
      %p622 = pneg %p621
      // Predicated region
      $region89: #{nmt_forward.1} parent=5 // pred_check
        _
      $region90: #{nmt_forward.1} parent=5 // pred_check_branch
        %624 = sbr.rel (%p621) target = $region92
      $region91: #{nmt_forward.1} parent=5 // pred_region
        %s625 = ssub.s32 %s27, 1
        %p626 = scmp.lt.s32.totalorder %s36, 1
        %s627 = scalar_select %p626, %s36, 1
        %s628 = smul.addr %s627, 8
        %s629 = scalar_lea.vmem %s0, %s628
        %p630 = pneg %p65
        %p631 = pneg %p62
        %p632 = pneg %p86
        %p633 = pneg %p83
        %p634 = pneg %p107
        %p635 = pneg %p104
        %p636 = pneg %p128
        %p637 = pneg %p125
        %p638 = pneg %p149
        %p639 = pneg %p146
        %p640 = pneg %p170
        %p641 = pneg %p167
        %p642 = pneg %p191
        %p643 = pneg %p188
        %p644 = pneg %p212
        %p645 = pneg %p209
        %p646 = scmp.lt.s32.totalorder %s37, 1
        %s647 = scalar_select %p646, %s37, 1
        %s648 = scalar_lea.vmem %s8, %s647
        %p649 = pneg %p238
        %p650 = pneg %p235
        %p651 = scmp.lt.s32.totalorder %s37, 1
        %s652 = scalar_select %p651, %s37, 1
        %s653 = scalar_lea.vmem %s9, %s652
        %p654 = pneg %p264
        %p655 = pneg %p261
        %p656 = scmp.lt.s32.totalorder %s37, 1
        %s657 = scalar_select %p656, %s37, 1
        %s658 = smul.addr %s657, 4
        %s659 = smul.addr %s658, 4
        %s660 = scalar_lea.vmem %s10, %s659
        %p661 = pneg %p290
        %p662 = pneg %p287
        %p663 = scmp.lt.s32.totalorder %s37, 1
        %s664 = scalar_select %p663, %s37, 1
        %s665 = smul.addr %s664, 4
        %s666 = smul.addr %s665, 4
        %s667 = scalar_lea.vmem %s11, %s666
        %p668 = pneg %p316
        %p669 = pneg %p313
        %p670 = scmp.lt.s32.totalorder %s37, 1
        %s671 = scalar_select %p670, %s37, 1
        %s672 = smul.addr %s671, 4
        %s673 = smul.addr %s672, 4
        %s674 = scalar_lea.vmem %s12, %s673
        %p675 = pneg %p342
        %p676 = pneg %p339
        %p677 = scmp.lt.s32.totalorder %s37, 1
        %s678 = scalar_select %p677, %s37, 1
        %s679 = smul.addr %s678, 4
        %s680 = smul.addr %s679, 4
        %s681 = scalar_lea.vmem %s13, %s680
        %p682 = pneg %p368
        %p683 = pneg %p365
        %p684 = scmp.lt.s32.totalorder %s37, 1
        %s685 = scalar_select %p684, %s37, 1
        %s686 = smul.addr %s685, 4
        %s687 = smul.addr %s686, 4
        %s688 = scalar_lea.vmem %s14, %s687
        %p689 = pneg %p394
        %p690 = pneg %p391
        %p691 = scmp.lt.s32.totalorder %s37, 1
        %s692 = scalar_select %p691, %s37, 1
        %s693 = scalar_lea.vmem %s15, %s692
        %p694 = pneg %p420
        %p695 = pneg %p417
        %p696 = scmp.lt.s32.totalorder %s37, 1
        %s697 = scalar_select %p696, %s37, 1
        %s698 = smul.addr %s697, 4
        %s699 = smul.addr %s698, 4
        %s700 = scalar_lea.vmem %s16, %s699
        %p701 = pneg %p446
        %p702 = pneg %p443
        %p703 = scmp.lt.s32.totalorder %s37, 1
        %s704 = scalar_select %p703, %s37, 1
        %s705 = smul.addr %s704, 16
        %s706 = smul.addr %s705, 4
        %s707 = scalar_lea.vmem %s17, %s706
        %p708 = pneg %p472
        %p709 = pneg %p469
        %p710 = pneg %p498
        %p711 = pneg %p495
        %s712 = sand.u32 %s485, 1
        %s713 = scalar_lea.sflag [#allocation4], %s712
        %s714 = sand.u32 %s485, 1
        %s715 = smul.addr %s714, 8
        %s716 = scalar_lea.vmem [#allocation3], %s715
        %p717 = scmp.lt.s32.totalorder %s36, 1
        %s718 = scalar_select %p717, %s36, 1
        %s719 = smul.addr %s718, 8
        %s720 = scalar_lea.vmem %s0, %s719
        %p721 = scmp.lt.s32.totalorder %s37, 1
        %s722 = scalar_select %p721, %s37, 1
        %s723 = scalar_lea.vmem %s8, %s722
        %p724 = scmp.lt.s32.totalorder %s37, 1
        %s725 = scalar_select %p724, %s37, 1
        %s726 = scalar_lea.vmem %s9, %s725
        %p727 = scmp.lt.s32.totalorder %s37, 1
        %s728 = scalar_select %p727, %s37, 1
        %s729 = smul.addr %s728, 4
        %s730 = smul.addr %s729, 4
        %s731 = scalar_lea.vmem %s10, %s730
        %p732 = scmp.lt.s32.totalorder %s37, 1
        %s733 = scalar_select %p732, %s37, 1
        %s734 = smul.addr %s733, 4
        %s735 = smul.addr %s734, 4
        %s736 = scalar_lea.vmem %s11, %s735
        %p737 = scmp.lt.s32.totalorder %s37, 1
        %s738 = scalar_select %p737, %s37, 1
        %s739 = smul.addr %s738, 4
        %s740 = smul.addr %s739, 4
        %s741 = scalar_lea.vmem %s12, %s740
        %p742 = scmp.lt.s32.totalorder %s37, 1
        %s743 = scalar_select %p742, %s37, 1
        %s744 = smul.addr %s743, 4
        %s745 = smul.addr %s744, 4
        %s746 = scalar_lea.vmem %s13, %s745
        %p747 = scmp.lt.s32.totalorder %s37, 1
        %s748 = scalar_select %p747, %s37, 1
        %s749 = smul.addr %s748, 4
        %s750 = smul.addr %s749, 4
        %s751 = scalar_lea.vmem %s14, %s750
        %p752 = scmp.lt.s32.totalorder %s37, 1
        %s753 = scalar_select %p752, %s37, 1
        %s754 = scalar_lea.vmem %s15, %s753
        %p755 = scmp.lt.s32.totalorder %s37, 1
        %s756 = scalar_select %p755, %s37, 1
        %s757 = smul.addr %s756, 4
        %s758 = smul.addr %s757, 4
        %s759 = scalar_lea.vmem %s16, %s758
        %p760 = scmp.lt.s32.totalorder %s37, 1
        %s761 = scalar_select %p760, %s37, 1
        %s762 = smul.addr %s761, 16
        %s763 = smul.addr %s762, 4
        %s764 = scalar_lea.vmem %s17, %s763
        %p766 = scmp.eq.s32.totalorder %s37, 0
        // Predicated region
        $region93: #{nmt_forward.1} parent=91 // pred_check
          %p767 = pneg %p766
        $region94: #{nmt_forward.1} parent=91 // pred_check_branch
          %769 = sbr.rel (%p767) target = $region96
        $region95: #{nmt_forward.1} parent=91 // pred_region
          %v770 = vld [vmem:[%s720] sm:$0xff]
          %vm771 = vcmask 261120
          %772 = vst.msk [vmem:[#allocation2] sm:$0xff] %vm771, %v770
        $region96: #{nmt_forward.1} parent=91 // pred_fallthru
          _
        %v773 = vld [vmem:[#allocation2] sm:$0xff]
        %v774 = vld [vmem:[%s723] sm:$0x1]
        %v775 = vmul.f32 %v773, %v773
        %vm776 = vcmask 261120
        %v777 = vsel %vm776, %v775, 0.0
        %778 = vadd.xlane.f32.xlu0 %v777
        %v779 = vpop.xlane.xlu0 %778
        %v780 = vrsqrt.pop %v779
        %v781 = vmul.f32 %v779, %v780
        %vm782 = vcmp.eq.f32.partialorder %v779, inf
        %v783 = vsel %vm782, %v779, %v781
        %vm784 = vcmp.eq.f32.partialorder %v779, 0.0
        %v785 = vand.u32 %v779, 2147483648
        %v786 = vsel %vm784, %v785, %v783
        %v787 = vmul.f32 %v786, 0.17677669
        %v789 = vlaneseq
        %v790 = vshrl.u32 %v789, 7
        %v791 = vsub.s32 0, %v790
        %v792 = vrot.slane %v774, %v791
        %v794 = vmul.f32 %v792, %v773
        %v795 = vadd.f32 %v787, 1e-08
        %v796 = vrcp.pop %v795
        %v797 = vmul.f32 %v794, %v796
        %v798 = vpack.c.bf16 %v797, %v797
        %v799 = vld [vmem:[%s731] sm:$0xf]
        %v800 = vld [vmem:[%s731 + $0x4] sm:$0xf]
        %v801 = vld [vmem:[%s731 + $0x8] sm:$0xf]
        %v802 = vld [vmem:[%s731 + $0xc] sm:$0xf]
        %v807 = vunpack.c.l.b16 %v799
        %v808 = vunpack.c.l.b16 %v800
        %v809 = vunpack.c.l.b16 %v801
        %v810 = vunpack.c.l.b16 %v802
        %v811 = vpack.c.b16 %v808, %v807
        %v812 = vpack.c.b16 %v810, %v809
        %v816 = vsel %vm776, %v798, 0
        %818 = vmatprep.subr.bf16.mxu0 0
        %819 = vmatpush1.bf16.msra.mxu0 %v811
        %820 = vmatprep.subr.bf16.mxu0 0
        %821 = vmatpush1.bf16.msra.mxu0 %v812
        %822 = vmatprep.subr.bf16.mxu0 0
        %823 = vmatpush1.bf16.msra.mxu0 0
        %824 = vmatprep.subr.bf16.mxu0 0
        %825 = vmatpush1.bf16.msra.mxu0 0
        %826 = vmatprep.subr.bf16.mxu0 0
        %827 = vmatpush1.bf16.msra.mxu0 0
        %828 = vmatprep.subr.bf16.mxu0 0
        %829 = vmatpush1.bf16.msra.mxu0 0
        %830 = vmatprep.subr.bf16.mxu0 0
        %831 = vmatpush1.bf16.msra.mxu0 0
        %832 = vmatprep.subr.bf16.mxu0 0
        %833 = vmatpush1.bf16.msra.mxu0 0
        %834 = vmatprep.subr.bf16.mxu0 0
        %835 = vmatpush1.bf16.msra.mxu0 0
        %836 = vmatprep.subr.bf16.mxu0 0
        %837 = vmatpush1.bf16.msra.mxu0 0
        %838 = vmatprep.subr.bf16.mxu0 0
        %839 = vmatpush1.bf16.msra.mxu0 0
        %840 = vmatprep.subr.bf16.mxu0 0
        %841 = vmatpush1.bf16.msra.mxu0 0
        %842 = vmatprep.subr.bf16.mxu0 0
        %843 = vmatpush1.bf16.msra.mxu0 0
        %844 = vmatprep.subr.bf16.mxu0 0
        %845 = vmatpush1.bf16.msra.mxu0 0
        %846 = vmatprep.subr.bf16.mxu0 0
        %847 = vmatpush1.bf16.msra.mxu0 0
        %848 = vmatprep.subr.bf16.mxu0 0
        %849 = vmatpush1.bf16.msra.mxu0 0
        %850 = vmatprep.mubr.bf16.mxu0 0
        %851 = vmatmul.mubr.bf16.gmra.mrb[0].mxu0 %v816
        %v852 = vpop.f32.mrb[0].mxu0
        %v853 = vadd.f32 0.0, %v852
        %v854 = vpop.f32.mrb[0].mxu0
        %v855 = vpop.f32.mrb[0].mxu0
        %v856 = vpop.f32.mrb[0].mxu0
        %857 = vdwg.mxu0
        %v858 = vld [vmem:[%s736] sm:$0xf]
        %v859 = vld [vmem:[%s736 + $0x4] sm:$0xf]
        %v860 = vld [vmem:[%s736 + $0x8] sm:$0xf]
        %v861 = vld [vmem:[%s736 + $0xc] sm:$0xf]
        %v866 = vunpack.c.l.b16 %v858
        %v867 = vunpack.c.l.b16 %v859
        %v868 = vunpack.c.l.b16 %v860
        %v869 = vunpack.c.l.b16 %v861
        %v870 = vpack.c.b16 %v867, %v866
        %v871 = vpack.c.b16 %v869, %v868
        %874 = vmatprep.subr.bf16.mxu0 0
        %875 = vmatpush1.bf16.msra.mxu0 %v870
        %876 = vmatprep.subr.bf16.mxu0 0
        %877 = vmatpush1.bf16.msra.mxu0 %v871
        %878 = vmatprep.subr.bf16.mxu0 0
        %879 = vmatpush1.bf16.msra.mxu0 0
        %880 = vmatprep.subr.bf16.mxu0 0
        %881 = vmatpush1.bf16.msra.mxu0 0
        %882 = vmatprep.subr.bf16.mxu0 0
        %883 = vmatpush1.bf16.msra.mxu0 0
        %884 = vmatprep.subr.bf16.mxu0 0
        %885 = vmatpush1.bf16.msra.mxu0 0
        %886 = vmatprep.subr.bf16.mxu0 0
        %887 = vmatpush1.bf16.msra.mxu0 0
        %888 = vmatprep.subr.bf16.mxu0 0
        %889 = vmatpush1.bf16.msra.mxu0 0
        %890 = vmatprep.subr.bf16.mxu0 0
        %891 = vmatpush1.bf16.msra.mxu0 0
        %892 = vmatprep.subr.bf16.mxu0 0
        %893 = vmatpush1.bf16.msra.mxu0 0
        %894 = vmatprep.subr.bf16.mxu0 0
        %895 = vmatpush1.bf16.msra.mxu0 0
        %896 = vmatprep.subr.bf16.mxu0 0
        %897 = vmatpush1.bf16.msra.mxu0 0
        %898 = vmatprep.subr.bf16.mxu0 0
        %899 = vmatpush1.bf16.msra.mxu0 0
        %900 = vmatprep.subr.bf16.mxu0 0
        %901 = vmatpush1.bf16.msra.mxu0 0
        %902 = vmatprep.subr.bf16.mxu0 0
        %903 = vmatpush1.bf16.msra.mxu0 0
        %904 = vmatprep.subr.bf16.mxu0 0
        %905 = vmatpush1.bf16.msra.mxu0 0
        %906 = vmatprep.mubr.bf16.mxu0 0
        %907 = vmatmul.mubr.bf16.gmra.mrb[0].mxu0 %v816
        %v908 = vpop.f32.mrb[0].mxu0
        %v909 = vadd.f32 0.0, %v908
        %v910 = vpop.f32.mrb[0].mxu0
        %v911 = vpop.f32.mrb[0].mxu0
        %v912 = vpop.f32.mrb[0].mxu0
        %913 = vdwg.mxu0
        %v914 = vld [vmem:[%s1] sm:$0xff]
        %v915 = vmul.f32 %v853, %v914
        %916 = vrot.lane.b32.xlu0 %v915, 64
        %v917 = vpop.permute.xlu0 %916
        %v918 = vadd.f32 %v915, %v917
        %v919 = vld [vmem:[%s2] sm:$0xff]
        %v920 = vld [vmem:[%s2 + $0x8] sm:$0xff]
        %v921 = vld [vmem:[%s2 + $0x10] sm:$0xff]
        %v922 = vld [vmem:[%s2 + $0x18] sm:$0xff]
        %v923 = vmul.f32 %v918, %v919
        %v924 = vmul.f32 %v918, %v920
        %v925 = vmul.f32 %v918, %v921
        %v926 = vmul.f32 %v918, %v922
        %v927 = vpack.c.bf16 %v924, %v923
        %v928 = vpack.c.bf16 %v926, %v925
        %v929 = vpack.c.bf16 %v918, %v918
        %v930 = vld [vmem:[%s3] sm:$0xff]
        %v931 = vld [vmem:[%s3 + $0x8] sm:$0xff]
        %v932 = vld [vmem:[%s3 + $0x10] sm:$0xff]
        %v933 = vld [vmem:[%s3 + $0x18] sm:$0xff]
        %935 = vrot.lane.b32.xlu0 %v929, 96
        %v936 = vpop.permute.xlu0 %935
        %v938 = vsel %vm776, %v927, 0
        %v941 = vsel %vm776, %v928, 0
        %v944 = vsel %vm776, %v936, 0
        %946 = vmatprep.subr.bf16.mxu0 0
        %947 = vmatpush1.bf16.xpose.msra.mxu0 %v944
        %948 = vmatprep.subr.bf16.mxu0 0
        %949 = vmatpush1.bf16.xpose.msra.mxu0 0
        %950 = vmatprep.subr.bf16.mxu0 0
        %951 = vmatpush1.bf16.xpose.msra.mxu0 0
        %952 = vmatprep.subr.bf16.mxu0 0
        %953 = vmatpush1.bf16.xpose.msra.mxu0 0
        %954 = vmatprep.subr.bf16.mxu0 0
        %955 = vmatpush1.bf16.xpose.msra.mxu0 0
        %956 = vmatprep.subr.bf16.mxu0 0
        %957 = vmatpush1.bf16.xpose.msra.mxu0 0
        %958 = vmatprep.subr.bf16.mxu0 0
        %959 = vmatpush1.bf16.xpose.msra.mxu0 0
        %960 = vmatprep.subr.bf16.mxu0 0
        %961 = vmatpush1.bf16.xpose.msra.mxu0 0
        %962 = vmatprep.subr.bf16.mxu0 0
        %963 = vmatpush1.bf16.xpose.msra.mxu0 0
        %964 = vmatprep.subr.bf16.mxu0 0
        %965 = vmatpush1.bf16.xpose.msra.mxu0 0
        %966 = vmatprep.subr.bf16.mxu0 0
        %967 = vmatpush1.bf16.xpose.msra.mxu0 0
        %968 = vmatprep.subr.bf16.mxu0 0
        %969 = vmatpush1.bf16.xpose.msra.mxu0 0
        %970 = vmatprep.subr.bf16.mxu0 0
        %971 = vmatpush1.bf16.xpose.msra.mxu0 0
        %972 = vmatprep.subr.bf16.mxu0 0
        %973 = vmatpush1.bf16.xpose.msra.mxu0 0
        %974 = vmatprep.subr.bf16.mxu0 0
        %975 = vmatpush1.bf16.xpose.msra.mxu0 0
        %976 = vmatprep.subr.bf16.mxu0 0
        %977 = vmatpush1.bf16.xpose.msra.mxu0 0
        %978 = vmatprep.mubr.bf16.mxu0 0
        %979 = vmatmul.mubr.bf16.gmra.mrb[0].mxu0 %v938
        %v980 = vpop.f32.mrb[0].mxu0
        %v981 = vadd.f32 %v930, %v980
        %v982 = vpop.f32.mrb[0].mxu0
        %v983 = vpop.f32.mrb[0].mxu0
        %v984 = vadd.f32 %v931, %v983
        %v985 = vpop.f32.mrb[0].mxu0
        %986 = vmatprep.mubr.bf16.mxu0 0
        %987 = vmatmul.mubr.bf16.gmra.mrb[0].mxu0 %v941
        %v988 = vpop.f32.mrb[0].mxu0
        %v989 = vadd.f32 %v932, %v988
        %v990 = vpop.f32.mrb[0].mxu0
        %v991 = vpop.f32.mrb[0].mxu0
        %v992 = vadd.f32 %v933, %v991
        %v993 = vpop.f32.mrb[0].mxu0
        %994 = vdwg.mxu0
        %vm995 = vcmask 64512
        %v996 = vsel %vm995, %v981, -inf
        %997 = vmax.xlane.f32.xlu0 %v996
        %v998 = vpop.xlane.xlu0 %997
        %v999 = vsel %vm995, %v984, -inf
        %1000 = vmax.xlane.f32.xlu0 %v999
        %v1001 = vpop.xlane.xlu0 %1000
        %v1002 = vsel %vm995, %v989, -inf
        %1003 = vmax.xlane.f32.xlu0 %v1002
        %v1004 = vpop.xlane.xlu0 %1003
        %v1005 = vsel %vm995, %v992, -inf
        %1006 = vmax.xlane.f32.xlu0 %v1005
        %v1007 = vpop.xlane.xlu0 %1006
        %v1008 = vsub.f32 %v981, %v998
        %v1009 = vsub.f32 %v984, %v1001
        %v1010 = vsub.f32 %v989, %v1004
        %v1011 = vsub.f32 %v992, %v1007
        %v1012 = vmul.f32 %v1008, 1.442695
        %v1013 = vpow.pop %v1012
        %v1014 = vmul.f32 %v1009, 1.442695
        %v1015 = vpow.pop %v1014
        %v1016 = vmul.f32 %v1010, 1.442695
        %v1017 = vpow.pop %v1016
        %v1018 = vmul.f32 %v1011, 1.442695
        %v1019 = vpow.pop %v1018
        %v1020 = vsel %vm995, %v1013, 0.0
        %1021 = vadd.xlane.f32.xlu0 %v1020
        %v1022 = vpop.xlane.xlu0 %1021
        %v1023 = vsel %vm995, %v1015, 0.0
        %1024 = vadd.xlane.f32.xlu0 %v1023
        %v1025 = vpop.xlane.xlu0 %1024
        %v1026 = vsel %vm995, %v1017, 0.0
        %1027 = vadd.xlane.f32.xlu0 %v1026
        %v1028 = vpop.xlane.xlu0 %1027
        %v1029 = vsel %vm995, %v1019, 0.0
        %1030 = vadd.xlane.f32.xlu0 %v1029
        %v1031 = vpop.xlane.xlu0 %1030
        %v1032 = vrcp.pop %v1022
        %v1033 = vrcp.pop %v1025
        %v1034 = vrcp.pop %v1028
        %v1035 = vrcp.pop %v1031
        %v1036 = vmul.f32 %v1013, %v1032
        %v1037 = vmul.f32 %v1015, %v1033
        %v1038 = vmul.f32 %v1017, %v1034
        %v1039 = vmul.f32 %v1019, %v1035
        %v1040 = vpack.c.bf16 %v1037, %v1036
        %v1041 = vpack.c.bf16 %v1039, %v1038
        %v1042 = vpack.c.bf16 %v909, %v909
        %v1044 = vsel %vm995, %v1040, 0
        %v1047 = vsel %vm995, %v1041, 0
        %vm1049 = vcmask 1043456
        %v1051 = vsel %vm1049, %v1042, 0
        %1053 = vmatprep.subr.bf16.mxu0 0
        %1054 = vmatpush1.bf16.msra.mxu0 %v1051
        %1055 = vmatprep.subr.bf16.mxu0 0
        %1056 = vmatpush1.bf16.msra.mxu0 0
        %1057 = vmatprep.subr.bf16.mxu0 0
        %1058 = vmatpush1.bf16.msra.mxu0 0
        %1059 = vmatprep.subr.bf16.mxu0 0
        %1060 = vmatpush1.bf16.msra.mxu0 0
        %1061 = vmatprep.subr.bf16.mxu0 0
        %1062 = vmatpush1.bf16.msra.mxu0 0
        %1063 = vmatprep.subr.bf16.mxu0 0
        %1064 = vmatpush1.bf16.msra.mxu0 0
        %1065 = vmatprep.subr.bf16.mxu0 0
        %1066 = vmatpush1.bf16.msra.mxu0 0
        %1067 = vmatprep.subr.bf16.mxu0 0
        %1068 = vmatpush1.bf16.msra.mxu0 0
        %1069 = vmatprep.subr.bf16.mxu0 0
        %1070 = vmatpush1.bf16.msra.mxu0 0
        %1071 = vmatprep.subr.bf16.mxu0 0
        %1072 = vmatpush1.bf16.msra.mxu0 0
        %1073 = vmatprep.subr.bf16.mxu0 0
        %1074 = vmatpush1.bf16.msra.mxu0 0
        %1075 = vmatprep.subr.bf16.mxu0 0
        %1076 = vmatpush1.bf16.msra.mxu0 0
        %1077 = vmatprep.subr.bf16.mxu0 0
        %1078 = vmatpush1.bf16.msra.mxu0 0
        %1079 = vmatprep.subr.bf16.mxu0 0
        %1080 = vmatpush1.bf16.msra.mxu0 0
        %1081 = vmatprep.subr.bf16.mxu0 0
        %1082 = vmatpush1.bf16.msra.mxu0 0
        %1083 = vmatprep.subr.bf16.mxu0 0
        %1084 = vmatpush1.bf16.msra.mxu0 0
        %1085 = vmatprep.mubr.bf16.mxu0 0
        %1086 = vmatmul.mubr.bf16.gmra.mrb[0].mxu0 %v1044
        %v1087 = vpop.f32.mrb[0].mxu0
        %v1088 = vadd.f32 0.0, %v1087
        %v1089 = vpop.f32.mrb[0].mxu0
        %v1090 = vpop.f32.mrb[0].mxu0
        %v1091 = vadd.f32 0.0, %v1090
        %v1092 = vpop.f32.mrb[0].mxu0
        %1093 = vmatprep.mubr.bf16.mxu0 0
        %1094 = vmatmul.mubr.bf16.gmra.mrb[0].mxu0 %v1047
        %v1095 = vpop.f32.mrb[0].mxu0
        %v1096 = vadd.f32 0.0, %v1095
        %v1097 = vpop.f32.mrb[0].mxu0
        %v1098 = vpop.f32.mrb[0].mxu0
        %v1099 = vadd.f32 0.0, %v1098
        %v1100 = vpop.f32.mrb[0].mxu0
        %1101 = vdwg.mxu0
        %v1102 = vmul.f32 %v1088, %v919
        %v1103 = vmul.f32 %v1091, %v920
        %v1104 = vmul.f32 %v1096, %v921
        %v1105 = vmul.f32 %v1099, %v922
        %v1106 = vadd.f32 %v1102, %v1103
        %v1107 = vadd.f32 %v1106, %v1104
        %v1108 = vadd.f32 %v1107, %v1105
        %v1109 = vpack.c.bf16 %v1108, %v1108
        %v1110 = vld [vmem:[%s741] sm:$0xf]
        %v1111 = vld [vmem:[%s741 + $0x4] sm:$0xf]
        %v1112 = vld [vmem:[%s741 + $0x8] sm:$0xf]
        %v1113 = vld [vmem:[%s741 + $0xc] sm:$0xf]
        %v1118 = vunpack.c.l.b16 %v1110
        %v1119 = vunpack.c.l.b16 %v1111
        %v1120 = vunpack.c.l.b16 %v1112
        %v1121 = vunpack.c.l.b16 %v1113
        %v1122 = vpack.c.b16 %v1119, %v1118
        %v1123 = vpack.c.b16 %v1121, %v1120
        %v1127 = vsel %vm776, %v1109, 0
        %1129 = vmatprep.subr.bf16.mxu0 0
        %1130 = vmatpush1.bf16.msra.mxu0 %v1122
        %1131 = vmatprep.subr.bf16.mxu0 0
        %1132 = vmatpush1.bf16.msra.mxu0 %v1123
        %1133 = vmatprep.subr.bf16.mxu0 0
        %1134 = vmatpush1.bf16.msra.mxu0 0
        %1135 = vmatprep.subr.bf16.mxu0 0
        %1136 = vmatpush1.bf16.msra.mxu0 0
        %1137 = vmatprep.subr.bf16.mxu0 0
        %1138 = vmatpush1.bf16.msra.mxu0 0
        %1139 = vmatprep.subr.bf16.mxu0 0
        %1140 = vmatpush1.bf16.msra.mxu0 0
        %1141 = vmatprep.subr.bf16.mxu0 0
        %1142 = vmatpush1.bf16.msra.mxu0 0
        %1143 = vmatprep.subr.bf16.mxu0 0
        %1144 = vmatpush1.bf16.msra.mxu0 0
        %1145 = vmatprep.subr.bf16.mxu0 0
        %1146 = vmatpush1.bf16.msra.mxu0 0
        %1147 = vmatprep.subr.bf16.mxu0 0
        %1148 = vmatpush1.bf16.msra.mxu0 0
        %1149 = vmatprep.subr.bf16.mxu0 0
        %1150 = vmatpush1.bf16.msra.mxu0 0
        %1151 = vmatprep.subr.bf16.mxu0 0
        %1152 = vmatpush1.bf16.msra.mxu0 0
        %1153 = vmatprep.subr.bf16.mxu0 0
        %1154 = vmatpush1.bf16.msra.mxu0 0
        %1155 = vmatprep.subr.bf16.mxu0 0
        %1156 = vmatpush1.bf16.msra.mxu0 0
        %1157 = vmatprep.subr.bf16.mxu0 0
        %1158 = vmatpush1.bf16.msra.mxu0 0
        %1159 = vmatprep.subr.bf16.mxu0 0
        %1160 = vmatpush1.bf16.msra.mxu0 0
        %1161 = vmatprep.mubr.bf16.mxu0 0
        %1162 = vmatmul.mubr.bf16.gmra.mrb[0].mxu0 %v1127
        %v1163 = vpop.f32.mrb[0].mxu0
        %v1164 = vadd.f32 0.0, %v1163
        %v1165 = vpop.f32.mrb[0].mxu0
        %v1166 = vpop.f32.mrb[0].mxu0
        %v1167 = vpop.f32.mrb[0].mxu0
        %1168 = vdwg.mxu0
        %v1169 = vadd.f32 %v773, %v1164
        %v1170 = vld [vmem:[%s726] sm:$0x1]
        %v1171 = vmul.f32 %v1169, %v1169
        %v1172 = vsel %vm776, %v1171, 0.0
        %1173 = vadd.xlane.f32.xlu0 %v1172
        %v1174 = vpop.xlane.xlu0 %1173
        %v1175 = vrsqrt.pop %v1174
        %v1176 = vmul.f32 %v1174, %v1175
        %vm1177 = vcmp.eq.f32.partialorder %v1174, inf
        %v1178 = vsel %vm1177, %v1174, %v1176
        %vm1179 = vcmp.eq.f32.partialorder %v1174, 0.0
        %v1180 = vand.u32 %v1174, 2147483648
        %v1181 = vsel %vm1179, %v1180, %v1178
        %v1182 = vmul.f32 %v1181, 0.17677669
        %v1184 = vlaneseq
        %v1185 = vshrl.u32 %v1184, 7
        %v1186 = vsub.s32 0, %v1185
        %v1187 = vrot.slane %v1170, %v1186
        %v1189 = vmul.f32 %v1187, %v1169
        %v1190 = vadd.f32 %v1182, 1e-08
        %v1191 = vrcp.pop %v1190
        %v1192 = vmul.f32 %v1189, %v1191
        %v1193 = vpack.c.bf16 %v1192, %v1192
        %v1194 = vld [vmem:[%s746] sm:$0xf]
        %v1195 = vld [vmem:[%s746 + $0x4] sm:$0xf]
        %v1196 = vld [vmem:[%s746 + $0x8] sm:$0xf]
        %v1197 = vld [vmem:[%s746 + $0xc] sm:$0xf]
        %v1202 = vunpack.c.l.b16 %v1194
        %v1203 = vunpack.c.l.b16 %v1195
        %v1204 = vunpack.c.l.b16 %v1196
        %v1205 = vunpack.c.l.b16 %v1197
        %v1206 = vpack.c.b16 %v1203, %v1202
        %v1207 = vpack.c.b16 %v1205, %v1204
        %v1211 = vsel %vm776, %v1193, 0
        %1213 = vmatprep.subr.bf16.mxu0 0
        %1214 = vmatpush1.bf16.msra.mxu0 %v1206
        %1215 = vmatprep.subr.bf16.mxu0 0
        %1216 = vmatpush1.bf16.msra.mxu0 %v1207
        %1217 = vmatprep.subr.bf16.mxu0 0
        %1218 = vmatpush1.bf16.msra.mxu0 0
        %1219 = vmatprep.subr.bf16.mxu0 0
        %1220 = vmatpush1.bf16.msra.mxu0 0
        %1221 = vmatprep.subr.bf16.mxu0 0
        %1222 = vmatpush1.bf16.msra.mxu0 0
        %1223 = vmatprep.subr.bf16.mxu0 0
        %1224 = vmatpush1.bf16.msra.mxu0 0
        %1225 = vmatprep.subr.bf16.mxu0 0
        %1226 = vmatpush1.bf16.msra.mxu0 0
        %1227 = vmatprep.subr.bf16.mxu0 0
        %1228 = vmatpush1.bf16.msra.mxu0 0
        %1229 = vmatprep.subr.bf16.mxu0 0
        %1230 = vmatpush1.bf16.msra.mxu0 0
        %1231 = vmatprep.subr.bf16.mxu0 0
        %1232 = vmatpush1.bf16.msra.mxu0 0
        %1233 = vmatprep.subr.bf16.mxu0 0
        %1234 = vmatpush1.bf16.msra.mxu0 0
        %1235 = vmatprep.subr.bf16.mxu0 0
        %1236 = vmatpush1.bf16.msra.mxu0 0
        %1237 = vmatprep.subr.bf16.mxu0 0
        %1238 = vmatpush1.bf16.msra.mxu0 0
        %1239 = vmatprep.subr.bf16.mxu0 0
        %1240 = vmatpush1.bf16.msra.mxu0 0
        %1241 = vmatprep.subr.bf16.mxu0 0
        %1242 = vmatpush1.bf16.msra.mxu0 0
        %1243 = vmatprep.subr.bf16.mxu0 0
        %1244 = vmatpush1.bf16.msra.mxu0 0
        %1245 = vmatprep.mubr.bf16.mxu0 0
        %1246 = vmatmul.mubr.bf16.gmra.mrb[0].mxu0 %v1211
        %v1247 = vpop.f32.mrb[0].mxu0
        %v1248 = vadd.f32 0.0, %v1247
        %v1249 = vpop.f32.mrb[0].mxu0
        %v1250 = vpop.f32.mrb[0].mxu0
        %v1251 = vpop.f32.mrb[0].mxu0
        %1252 = vdwg.mxu0
        %v1253 = vpack.c.bf16 %v1248, %v1248
        %v1254 = vld [vmem:[%s4] sm:$0xf]
        %v1255 = vld [vmem:[%s4 + $0x4] sm:$0xf]
        %v1256 = vld [vmem:[%s4 + $0x8] sm:$0xf]
        %v1257 = vld [vmem:[%s4 + $0xc] sm:$0xf]
        %v1258 = vld [vmem:[%s4 + $0x10] sm:$0xf]
        %v1259 = vld [vmem:[%s4 + $0x14] sm:$0xf]
        %v1260 = vld [vmem:[%s4 + $0x18] sm:$0xf]
        %v1261 = vld [vmem:[%s4 + $0x1c] sm:$0xf]
        %v1262 = vld [vmem:[%s5] sm:$0x1]
        %v1264 = vlaneseq
        %v1265 = vshrl.u32 %v1264, 7
        %v1266 = vsub.s32 0, %v1265
        %v1267 = vrot.slane %v1262, %v1266
        %v1277 = vunpack.c.l.b16 %v1254
        %v1278 = vunpack.c.l.b16 %v1255
        %v1279 = vunpack.c.l.b16 %v1256
        %v1280 = vunpack.c.l.b16 %v1257
        %v1281 = vunpack.c.l.b16 %v1258
        %v1282 = vunpack.c.l.b16 %v1259
        %v1283 = vunpack.c.l.b16 %v1260
        %v1284 = vunpack.c.l.b16 %v1261
        %v1285 = vpack.c.b16 %v1278, %v1277
        %v1286 = vpack.c.b16 %v1280, %v1279
        %v1287 = vpack.c.b16 %v1282, %v1281
        %v1288 = vpack.c.b16 %v1284, %v1283
        %vm1293 = vcmask 523264
        %v1295 = vsel %vm1293, %v1253, 0
        %1297 = vmatprep.subr.bf16.mxu0 0
        %1298 = vmatpush1.bf16.msra.mxu0 %v1285
        %1299 = vmatprep.subr.bf16.mxu0 0
        %1300 = vmatpush1.bf16.msra.mxu0 %v1286
        %1301 = vmatprep.subr.bf16.mxu0 0
        %1302 = vmatpush1.bf16.msra.mxu0 %v1287
        %1303 = vmatprep.subr.bf16.mxu0 0
        %1304 = vmatpush1.bf16.msra.mxu0 %v1288
        %1305 = vmatprep.subr.bf16.mxu0 0
        %1306 = vmatpush1.bf16.msra.mxu0 0
        %1307 = vmatprep.subr.bf16.mxu0 0
        %1308 = vmatpush1.bf16.msra.mxu0 0
        %1309 = vmatprep.subr.bf16.mxu0 0
        %1310 = vmatpush1.bf16.msra.mxu0 0
        %1311 = vmatprep.subr.bf16.mxu0 0
        %1312 = vmatpush1.bf16.msra.mxu0 0
        %1313 = vmatprep.subr.bf16.mxu0 0
        %1314 = vmatpush1.bf16.msra.mxu0 0
        %1315 = vmatprep.subr.bf16.mxu0 0
        %1316 = vmatpush1.bf16.msra.mxu0 0
        %1317 = vmatprep.subr.bf16.mxu0 0
        %1318 = vmatpush1.bf16.msra.mxu0 0
        %1319 = vmatprep.subr.bf16.mxu0 0
        %1320 = vmatpush1.bf16.msra.mxu0 0
        %1321 = vmatprep.subr.bf16.mxu0 0
        %1322 = vmatpush1.bf16.msra.mxu0 0
        %1323 = vmatprep.subr.bf16.mxu0 0
        %1324 = vmatpush1.bf16.msra.mxu0 0
        %1325 = vmatprep.subr.bf16.mxu0 0
        %1326 = vmatpush1.bf16.msra.mxu0 0
        %1327 = vmatprep.subr.bf16.mxu0 0
        %1328 = vmatpush1.bf16.msra.mxu0 0
        %1329 = vmatprep.mubr.bf16.mxu0 0
        %1330 = vmatmul.mubr.bf16.gmra.mrb[0].mxu0 %v1295
        %v1331 = vpop.f32.mrb[0].mxu0
        %v1332 = vadd.f32 %v1267, %v1331
        %v1333 = vpop.f32.mrb[0].mxu0
        %v1334 = vpop.f32.mrb[0].mxu0
        %v1335 = vpop.f32.mrb[0].mxu0
        %1336 = vdwg.mxu0
        %v1337 = vmax.f32 %v1332, 0.0
        %v1338 = vpack.c.bf16 %v1337, %v1337
        %v1339 = vld [vmem:[%s751] sm:$0xf]
        %v1340 = vld [vmem:[%s751 + $0x4] sm:$0xf]
        %v1341 = vld [vmem:[%s751 + $0x8] sm:$0xf]
        %v1342 = vld [vmem:[%s751 + $0xc] sm:$0xf]
        %v1343 = vld [vmem:[%s754] sm:$0x1]
        %v1345 = vlaneseq
        %v1346 = vshrl.u32 %v1345, 7
        %v1347 = vsub.s32 0, %v1346
        %v1348 = vrot.slane %v1343, %v1347
        %v1354 = vunpack.c.l.b16 %v1339
        %v1355 = vunpack.c.l.b16 %v1340
        %v1356 = vunpack.c.l.b16 %v1341
        %v1357 = vunpack.c.l.b16 %v1342
        %v1358 = vpack.c.b16 %v1355, %v1354
        %v1359 = vpack.c.b16 %v1357, %v1356
        %v1363 = vsel %vm776, %v1338, 0
        %1365 = vmatprep.subr.bf16.mxu0 0
        %1366 = vmatpush1.bf16.msra.mxu0 %v1358
        %1367 = vmatprep.subr.bf16.mxu0 0
        %1368 = vmatpush1.bf16.msra.mxu0 %v1359
        %1369 = vmatprep.subr.bf16.mxu0 0
        %1370 = vmatpush1.bf16.msra.mxu0 0
        %1371 = vmatprep.subr.bf16.mxu0 0
        %1372 = vmatpush1.bf16.msra.mxu0 0
        %1373 = vmatprep.subr.bf16.mxu0 0
        %1374 = vmatpush1.bf16.msra.mxu0 0
        %1375 = vmatprep.subr.bf16.mxu0 0
        %1376 = vmatpush1.bf16.msra.mxu0 0
        %1377 = vmatprep.subr.bf16.mxu0 0
        %1378 = vmatpush1.bf16.msra.mxu0 0
        %1379 = vmatprep.subr.bf16.mxu0 0
        %1380 = vmatpush1.bf16.msra.mxu0 0
        %1381 = vmatprep.subr.bf16.mxu0 0
        %1382 = vmatpush1.bf16.msra.mxu0 0
        %1383 = vmatprep.subr.bf16.mxu0 0
        %1384 = vmatpush1.bf16.msra.mxu0 0
        %1385 = vmatprep.subr.bf16.mxu0 0
        %1386 = vmatpush1.bf16.msra.mxu0 0
        %1387 = vmatprep.subr.bf16.mxu0 0
        %1388 = vmatpush1.bf16.msra.mxu0 0
        %1389 = vmatprep.subr.bf16.mxu0 0
        %1390 = vmatpush1.bf16.msra.mxu0 0
        %1391 = vmatprep.subr.bf16.mxu0 0
        %1392 = vmatpush1.bf16.msra.mxu0 0
        %1393 = vmatprep.subr.bf16.mxu0 0
        %1394 = vmatpush1.bf16.msra.mxu0 0
        %1395 = vmatprep.subr.bf16.mxu0 0
        %1396 = vmatpush1.bf16.msra.mxu0 0
        %1397 = vmatprep.mubr.bf16.mxu0 0
        %1398 = vmatmul.mubr.bf16.gmra.mrb[0].mxu0 %v1363
        %v1399 = vpop.f32.mrb[0].mxu0
        %v1400 = vadd.f32 %v1348, %v1399
        %v1401 = vpop.f32.mrb[0].mxu0
        %v1402 = vpop.f32.mrb[0].mxu0
        %v1403 = vpop.f32.mrb[0].mxu0
        %1404 = vdwg.mxu0
        %1406 = vrot.lane.b32.xlu0 %v1400, 96
        %v1407 = vpop.permute.xlu0 %1406
        %v1409 = vadd.f32 %v1248, %v1407
        %v1410 = vsub.f32 0.0, %v1409
        %v1411 = vmul.f32 %v1410, 1.442695
        %v1412 = vpow.pop %v1411
        %v1413 = vadd.f32 %v1412, 1.0
        %v1414 = vrcp.pop %v1413
        %v1415 = vmul.f32 1.0, %v1414
        %v1416 = vmul.f32 %v1415, %v1400
        %v1417 = vadd.f32 %v1169, %v1416
        %v1418 = vmul.f32 %v1417, %v1417
        %v1419 = vsel %vm776, %v1418, 0.0
        %1420 = vadd.xlane.f32.xlu0 %v1419
        %v1421 = vpop.xlane.xlu0 %1420
        %v1422 = vrsqrt.pop %v1421
        %v1423 = vmul.f32 %v1421, %v1422
        %vm1424 = vcmp.eq.f32.partialorder %v1421, inf
        %v1425 = vsel %vm1424, %v1421, %v1423
        %vm1426 = vcmp.eq.f32.partialorder %v1421, 0.0
        %v1427 = vand.u32 %v1421, 2147483648
        %v1428 = vsel %vm1426, %v1427, %v1425
        %v1429 = vmul.f32 %v1428, 0.17677669
        %v1430 = vmul.f32 %v1187, %v1417
        %v1431 = vadd.f32 %v1429, 1e-08
        %v1432 = vrcp.pop %v1431
        %v1433 = vmul.f32 %v1430, %v1432
        %v1434 = vpack.c.bf16 %v1433, %v1433
        %v1435 = vld [vmem:[%s759] sm:$0xf]
        %v1436 = vld [vmem:[%s759 + $0x4] sm:$0xf]
        %v1437 = vld [vmem:[%s759 + $0x8] sm:$0xf]
        %v1438 = vld [vmem:[%s759 + $0xc] sm:$0xf]
        %v1443 = vunpack.c.l.b16 %v1435
        %v1444 = vunpack.c.l.b16 %v1436
        %v1445 = vunpack.c.l.b16 %v1437
        %v1446 = vunpack.c.l.b16 %v1438
        %v1447 = vpack.c.b16 %v1444, %v1443
        %v1448 = vpack.c.b16 %v1446, %v1445
        %v1452 = vsel %vm776, %v1434, 0
        %1454 = vmatprep.subr.bf16.mxu0 0
        %1455 = vmatpush1.bf16.msra.mxu0 %v1447
        %1456 = vmatprep.subr.bf16.mxu0 0
        %1457 = vmatpush1.bf16.msra.mxu0 %v1448
        %1458 = vmatprep.subr.bf16.mxu0 0
        %1459 = vmatpush1.bf16.msra.mxu0 0
        %1460 = vmatprep.subr.bf16.mxu0 0
        %1461 = vmatpush1.bf16.msra.mxu0 0
        %1462 = vmatprep.subr.bf16.mxu0 0
        %1463 = vmatpush1.bf16.msra.mxu0 0
        %1464 = vmatprep.subr.bf16.mxu0 0
        %1465 = vmatpush1.bf16.msra.mxu0 0
        %1466 = vmatprep.subr.bf16.mxu0 0
        %1467 = vmatpush1.bf16.msra.mxu0 0
        %1468 = vmatprep.subr.bf16.mxu0 0
        %1469 = vmatpush1.bf16.msra.mxu0 0
        %1470 = vmatprep.subr.bf16.mxu0 0
        %1471 = vmatpush1.bf16.msra.mxu0 0
        %1472 = vmatprep.subr.bf16.mxu0 0
        %1473 = vmatpush1.bf16.msra.mxu0 0
        %1474 = vmatprep.subr.bf16.mxu0 0
        %1475 = vmatpush1.bf16.msra.mxu0 0
        %1476 = vmatprep.subr.bf16.mxu0 0
        %1477 = vmatpush1.bf16.msra.mxu0 0
        %1478 = vmatprep.subr.bf16.mxu0 0
        %1479 = vmatpush1.bf16.msra.mxu0 0
        %1480 = vmatprep.subr.bf16.mxu0 0
        %1481 = vmatpush1.bf16.msra.mxu0 0
        %1482 = vmatprep.subr.bf16.mxu0 0
        %1483 = vmatpush1.bf16.msra.mxu0 0
        %1484 = vmatprep.subr.bf16.mxu0 0
        %1485 = vmatpush1.bf16.msra.mxu0 0
        %1486 = vmatprep.mubr.bf16.mxu0 0
        %1487 = vmatmul.mubr.bf16.gmra.mrb[0].mxu0 %v1452
        %v1488 = vpop.f32.mrb[0].mxu0
        %v1489 = vadd.f32 0.0, %v1488
        %v1490 = vpop.f32.mrb[0].mxu0
        %v1491 = vpop.f32.mrb[0].mxu0
        %v1492 = vpop.f32.mrb[0].mxu0
        %1493 = vdwg.mxu0
        %v1494 = vsub.f32 0.0, %v1489
        %v1495 = vmul.f32 %v1494, 1.442695
        %v1496 = vpow.pop %v1495
        %v1497 = vadd.f32 %v1496, 1.0
        %v1498 = vrcp.pop %v1497
        %v1499 = vmul.f32 1.0, %v1498
        %v1500 = vmul.f32 %v1489, %v1499
        %1501 = vrot.lane.b32.xlu0 %v1489, 64
        %v1502 = vpop.permute.xlu0 %1501
        %v1503 = vmul.f32 %v1500, %v1502
        %v1504 = vpack.c.bf16 %v1503, %v1503
        %v1505 = vld [vmem:[%s764] sm:$0xf]
        %v1506 = vld [vmem:[%s764 + $0x4] sm:$0xf]
        %v1507 = vld [vmem:[%s764 + $0x8] sm:$0xf]
        %v1508 = vld [vmem:[%s764 + $0xc] sm:$0xf]
        %v1509 = vld [vmem:[%s764 + $0x10] sm:$0xf]
        %v1510 = vld [vmem:[%s764 + $0x14] sm:$0xf]
        %v1511 = vld [vmem:[%s764 + $0x18] sm:$0xf]
        %v1512 = vld [vmem:[%s764 + $0x1c] sm:$0xf]
        %v1513 = vld [vmem:[%s764 + $0x20] sm:$0xf]
        %v1514 = vld [vmem:[%s764 + $0x24] sm:$0xf]
        %v1515 = vld [vmem:[%s764 + $0x28] sm:$0xf]
        %v1516 = vld [vmem:[%s764 + $0x2c] sm:$0xf]
        %v1517 = vld [vmem:[%s764 + $0x30] sm:$0xf]
        %v1518 = vld [vmem:[%s764 + $0x34] sm:$0xf]
        %v1519 = vld [vmem:[%s764 + $0x38] sm:$0xf]
        %v1520 = vld [vmem:[%s764 + $0x3c] sm:$0xf]
        %v1537 = vunpack.c.l.b16 %v1505
        %v1538 = vunpack.c.l.b16 %v1506
        %v1539 = vunpack.c.l.b16 %v1507
        %v1540 = vunpack.c.l.b16 %v1508
        %v1541 = vunpack.c.l.b16 %v1509
        %v1542 = vunpack.c.l.b16 %v1510
        %v1543 = vunpack.c.l.b16 %v1511
        %v1544 = vunpack.c.l.b16 %v1512
        %v1545 = vunpack.c.l.b16 %v1513
        %v1546 = vunpack.c.l.b16 %v1514
        %v1547 = vunpack.c.l.b16 %v1515
        %v1548 = vunpack.c.l.b16 %v1516
        %v1549 = vunpack.c.l.b16 %v1517
        %v1550 = vunpack.c.l.b16 %v1518
        %v1551 = vunpack.c.l.b16 %v1519
        %v1552 = vunpack.c.l.b16 %v1520
        %v1553 = vpack.c.b16 %v1538, %v1537
        %v1554 = vpack.c.b16 %v1540, %v1539
        %v1555 = vpack.c.b16 %v1542, %v1541
        %v1556 = vpack.c.b16 %v1544, %v1543
        %v1557 = vpack.c.b16 %v1546, %v1545
        %v1558 = vpack.c.b16 %v1548, %v1547
        %v1559 = vpack.c.b16 %v1550, %v1549
        %v1560 = vpack.c.b16 %v1552, %v1551
        %1569 = vmatprep.subr.bf16.mxu0 0
        %1570 = vmatpush1.bf16.msra.mxu0 %v1553
        %1571 = vmatprep.subr.bf16.mxu0 0
        %1572 = vmatpush1.bf16.msra.mxu0 %v1554
        %1573 = vmatprep.subr.bf16.mxu0 0
        %1574 = vmatpush1.bf16.msra.mxu0 %v1555
        %1575 = vmatprep.subr.bf16.mxu0 0
        %1576 = vmatpush1.bf16.msra.mxu0 %v1556
        %1577 = vmatprep.subr.bf16.mxu0 0
        %1578 = vmatpush1.bf16.msra.mxu0 %v1557
        %1579 = vmatprep.subr.bf16.mxu0 0
        %1580 = vmatpush1.bf16.msra.mxu0 %v1558
        %1581 = vmatprep.subr.bf16.mxu0 0
        %1582 = vmatpush1.bf16.msra.mxu0 %v1559
        %1583 = vmatprep.subr.bf16.mxu0 0
        %1584 = vmatpush1.bf16.msra.mxu0 %v1560
        %1585 = vmatprep.subr.bf16.mxu0 0
        %1586 = vmatpush1.bf16.msra.mxu0 0
        %1587 = vmatprep.subr.bf16.mxu0 0
        %1588 = vmatpush1.bf16.msra.mxu0 0
        %1589 = vmatprep.subr.bf16.mxu0 0
        %1590 = vmatpush1.bf16.msra.mxu0 0
        %1591 = vmatprep.subr.bf16.mxu0 0
        %1592 = vmatpush1.bf16.msra.mxu0 0
        %1593 = vmatprep.subr.bf16.mxu0 0
        %1594 = vmatpush1.bf16.msra.mxu0 0
        %1595 = vmatprep.subr.bf16.mxu0 0
        %1596 = vmatpush1.bf16.msra.mxu0 0
        %1597 = vmatprep.subr.bf16.mxu0 0
        %1598 = vmatpush1.bf16.msra.mxu0 0
        %1599 = vmatprep.subr.bf16.mxu0 0
        %1600 = vmatpush1.bf16.msra.mxu0 0
        %1601 = vmatprep.mubr.bf16.mxu0 0
        %1602 = vmatmul.mubr.bf16.gmra.mrb[0].mxu0 %v1504
        %v1603 = vpop.f32.mrb[0].mxu0
        %v1604 = vadd.f32 0.0, %v1603
        %v1605 = vpop.f32.mrb[0].mxu0
        %v1606 = vpop.f32.mrb[0].mxu0
        %v1607 = vpop.f32.mrb[0].mxu0
        %1608 = vdwg.mxu0
        %v1609 = vadd.f32 %v1417, %v1604
        %1610 = vst.msk [vmem:[#allocation2] sm:$0xff] %vm776, %v1609
        %p1611 = scmp.eq.s32.totalorder %s37, 1
        // Predicated region
        $region97: #{nmt_forward.1} parent=91 // pred_check
          %p1612 = pneg %p1611
        $region98: #{nmt_forward.1} parent=91 // pred_check_branch
          %1614 = sbr.rel (%p1612) target = $region100
        $region99: #{nmt_forward.1} parent=91 // pred_region
          %v1615 = vld [vmem:[%s6] sm:$0x1]
          %v1616 = vmul.f32 %v1609, %v1609
          %v1617 = vsel %vm776, %v1616, 0.0
          %1618 = vadd.xlane.f32.xlu0 %v1617
          %v1619 = vpop.xlane.xlu0 %1618
          %v1620 = vrsqrt.pop %v1619
          %v1621 = vmul.f32 %v1619, %v1620
          %vm1622 = vcmp.eq.f32.partialorder %v1619, inf
          %v1623 = vsel %vm1622, %v1619, %v1621
          %vm1624 = vcmp.eq.f32.partialorder %v1619, 0.0
          %v1625 = vand.u32 %v1619, 2147483648
          %v1626 = vsel %vm1624, %v1625, %v1623
          %v1627 = vmul.f32 %v1626, 0.17677669
          %v1629 = vlaneseq
          %v1630 = vshrl.u32 %v1629, 7
          %v1631 = vsub.s32 0, %v1630
          %v1632 = vrot.slane %v1615, %v1631
          %v1634 = vmul.f32 %v1632, %v1609
          %v1635 = vadd.f32 %v1627, 1e-08
          %v1636 = vrcp.pop %v1635
          %v1637 = vmul.f32 %v1634, %v1636
          %v1638 = vpack.c.bf16 %v1637, %v1637
          %v1639 = vld [vmem:[%s7] sm:$0xf]
          %v1640 = vld [vmem:[%s7 + $0x4] sm:$0xf]
          %v1641 = vld [vmem:[%s7 + $0x8] sm:$0xf]
          %v1642 = vld [vmem:[%s7 + $0xc] sm:$0xf]
          %v1647 = vunpack.c.l.b16 %v1639
          %v1648 = vunpack.c.l.b16 %v1640
          %v1649 = vunpack.c.l.b16 %v1641
          %v1650 = vunpack.c.l.b16 %v1642
          %v1651 = vpack.c.b16 %v1648, %v1647
          %v1652 = vpack.c.b16 %v1650, %v1649
          %v1656 = vsel %vm776, %v1638, 0
          %1658 = vmatprep.subr.bf16.mxu0 0
          %1659 = vmatpush1.bf16.msra.mxu0 %v1651
          %1660 = vmatprep.subr.bf16.mxu0 0
          %1661 = vmatpush1.bf16.msra.mxu0 %v1652
          %1662 = vmatprep.subr.bf16.mxu0 0
          %1663 = vmatpush1.bf16.msra.mxu0 0
          %1664 = vmatprep.subr.bf16.mxu0 0
          %1665 = vmatpush1.bf16.msra.mxu0 0
          %1666 = vmatprep.subr.bf16.mxu0 0
          %1667 = vmatpush1.bf16.msra.mxu0 0
          %1668 = vmatprep.subr.bf16.mxu0 0
          %1669 = vmatpush1.bf16.msra.mxu0 0
          %1670 = vmatprep.subr.bf16.mxu0 0
          %1671 = vmatpush1.bf16.msra.mxu0 0
          %1672 = vmatprep.subr.bf16.mxu0 0
          %1673 = vmatpush1.bf16.msra.mxu0 0
          %1674 = vmatprep.subr.bf16.mxu0 0
          %1675 = vmatpush1.bf16.msra.mxu0 0
          %1676 = vmatprep.subr.bf16.mxu0 0
          %1677 = vmatpush1.bf16.msra.mxu0 0
          %1678 = vmatprep.subr.bf16.mxu0 0
          %1679 = vmatpush1.bf16.msra.mxu0 0
          %1680 = vmatprep.subr.bf16.mxu0 0
          %1681 = vmatpush1.bf16.msra.mxu0 0
          %1682 = vmatprep.subr.bf16.mxu0 0
          %1683 = vmatpush1.bf16.msra.mxu0 0
          %1684 = vmatprep.subr.bf16.mxu0 0
          %1685 = vmatpush1.bf16.msra.mxu0 0
          %1686 = vmatprep.subr.bf16.mxu0 0
          %1687 = vmatpush1.bf16.msra.mxu0 0
          %1688 = vmatprep.subr.bf16.mxu0 0
          %1689 = vmatpush1.bf16.msra.mxu0 0
          %1690 = vmatprep.mubr.bf16.mxu0 0
          %1691 = vmatmul.mubr.bf16.gmra.mrb[0].mxu0 %v1656
          %v1692 = vpop.f32.mrb[0].mxu0
          %v1693 = vadd.f32 0.0, %v1692
          %v1694 = vpop.f32.mrb[0].mxu0
          %v1695 = vpop.f32.mrb[0].mxu0
          %v1696 = vpop.f32.mrb[0].mxu0
          %1697 = vdwg.mxu0
          %1698 = vst [vmem:[%s716] sm:$0xff] %v1693
        $region100: #{nmt_forward.1} parent=91 // pred_fallthru
          _
        %s1699 = sand.u32 %s485, 1
        %s1700 = scalar_lea.sflag [#allocation4], %s1699
        %s1701 = sand.u32 %s485, 1
        %s1702 = smul.addr %s1701, 8
        %s1703 = scalar_lea.vmem [#allocation3], %s1702
        // Predicated region
        $region101: #{nmt_forward.1} parent=91 // pred_check
          %p1704 = pneg %p495
        $region102: #{nmt_forward.1} parent=91 // pred_check_branch
          %1706 = sbr.rel (%p1704) target = $region104
        $region103: #{nmt_forward.1} parent=91 // pred_region
          %s1708 = ssub.s32 128, 128
          %1709 = vsyncadd %s1700, %s1708
          %s1710 = smul.addr %s36, 128
          %s1711 = scalar_lea.hbm %s18, %s1710
          %s1713 = sshll.u32 %s1703, 4
          %s1714 = int_to_ptr.vmem [resolvable:$true] %s1713
          %1716 = dma.vmem_to_hbm [thread:$0]  %s1714, 128, %s1711, %s1700
        $region104: #{nmt_forward.1} parent=91 // pred_fallthru
          _
      $region92: #{nmt_forward.1} parent=5 // pred_fallthru
        _
      %p1717 = scmp.le.s32.totalorder 2, %s27
      // Predicated region
      $region105: #{nmt_forward.1} parent=5 // pred_check
        %p1718 = pneg %p1717
      $region106: #{nmt_forward.1} parent=5 // pred_check_branch
        %1720 = sbr.rel (%p1718) target = $region108
      $region107: #{nmt_forward.1} parent=5 // pred_region
        %s1721 = ssub.s32 %s27, 2
        // Predicated region
        $region109: #{nmt_forward.1} parent=107 // pred_check
          %p1722 = pneg %p501
        $region110: #{nmt_forward.1} parent=107 // pred_check_branch
          %1724 = sbr.rel (%p1722) target = $region112
        $region111: #{nmt_forward.1} parent=107 // pred_region
          %s1725 = sand.u32 %s486, 1
          %s1726 = scalar_lea.sflag [#allocation4], %s1725
          %s1727 = sand.u32 %s486, 1
          %s1728 = smul.addr %s1727, 8
          %s1729 = scalar_lea.vmem [#allocation3], %s1728
          %1730 = dma.done %s1726, 128
        $region112: #{nmt_forward.1} parent=107 // pred_fallthru
          _
      $region108: #{nmt_forward.1} parent=5 // pred_fallthru
        _
    $region6: #{nmt_forward.1} parent=1 // loop_footer
      %s31 = sadd.s32 1, %s27
    $region7: #{nmt_forward.1} parent=1 // loop_footer_branch
      %26 = sbr.rel target = $region3
    $region8: #{nmt_forward.1} parent=1 // loop_exit
      _
    %1731 = vsyncpa [#allocation4], 1
    %s1732 = scalar_lea.sflag [#allocation4], 1
    %1733 = vsyncpa %s1732, 1

</llo_original>
